<compile_context>
chip_gen: v7x
topology: tpu7x:2x2x1
jax: 0.10.0
libtpu: 0.0.40
codegen_flags: <defaults>
</compile_context>

<pallas_src>
import jax
import jax.numpy as jnp
from jax.experimental import pallas as pl
from jax.experimental.pallas import tpu as pltpu


# ----------------------------- config (small) -----------------------------
VOCAB = 128
HIDDEN = 32
NUM_LAYERS = 2
NUM_HEADS = 2
HEAD_DIM = HIDDEN // NUM_HEADS
INTERMEDIATE = 64
MAX_POS = 64
TYPE_VOCAB = 2
NUM_CLASSES = 3
LN_EPS = 1e-12

BATCH = 2
SEQ = 8

# Packed-buffer layout constants.
W_ROWS = max(HIDDEN, INTERMEDIATE)            # 64
W_COLS = max(3 * HIDDEN, INTERMEDIATE)        # 96
WQKV, WO, WFF1, WFF2 = range(4)               # w_layers matrix slots
BQKV, BO, LN1G, LN1B, BFF1, BFF2, LN2G, LN2B = range(8)   # b_layers rows
EMB_LN_G, EMB_LN_B, POOL_B, FC_B = range(4)   # b_head rows
POOL_W, FC_W = range(2)                       # w_head slots


# ----------------------------- shared helpers ------------------------------
def _gelu(x):
    # TODO(synk): pytorch_pretrained_bert uses the erf-based GELU; tanh
    # approximation used here (differs at ~1e-3 level).
    return 0.5 * x * (1.0 + jnp.tanh(0.7978845608028654 * (x + 0.044715 * x * x * x)))


def _layernorm(x, g, b):
    x = x.astype(jnp.float32)
    mean = jnp.mean(x, axis=-1, keepdims=True)
    centered = x - mean
    var = jnp.mean(centered * centered, axis=-1, keepdims=True)
    inv = jax.lax.rsqrt(var + LN_EPS)
    return centered * inv * g + b


# ------------------------- single fused forward kernel ---------------------
def _bert_forward_kernel(
    emb_ref,      # (B*S, H)                 summed word+pos+type embeddings
    bias_ref,     # (B*NH*S, B*S)            additive attention bias (pad + cross-batch)
    wl_ref,       # (L, 4, W_ROWS, W_COLS)   per-layer matrices (padded slots)
    bl_ref,       # (L, 8, W_COLS)           per-layer bias / LayerNorm vectors
    wh_ref,       # (2, H, H)                pooler / fc matrices
    bh_ref,       # (4, W_COLS)              emb-LN / pooler / fc vectors
    out_ref,      # (B, C)
):
    scale = 1.0 / (HEAD_DIM ** 0.5)

    # Lane masks selecting each head's HEAD_DIM-wide slice of the hidden dim.
    lane = jax.lax.broadcasted_iota(jnp.int32, (1, HIDDEN), 1)
    head_masks = [
        ((lane >= hd * HEAD_DIM) & (lane < (hd + 1) * HEAD_DIM)).astype(jnp.float32)
        for hd in range(NUM_HEADS)
    ]

    bias_full = bias_ref[...]                  # (B*NH*S, B*S), hoisted once
    bh = bh_ref[...]                           # (4, W_COLS)

    # ---- embedding LayerNorm ----
    h = _layernorm(emb_ref[...],
                   bh[EMB_LN_G:EMB_LN_G + 1, 0:HIDDEN],
                   bh[EMB_LN_B:EMB_LN_B + 1, 0:HIDDEN])          # (B*S, H)

    # ---- transformer layers (statically unrolled) ----
    for l in range(NUM_LAYERS):
        wqkv = wl_ref[l, WQKV, 0:HIDDEN, :]                       # (H, 3H)
        wo = wl_ref[l, WO, 0:HIDDEN, 0:HIDDEN]                    # (H, H)
        wff1 = wl_ref[l, WFF1, 0:HIDDEN, 0:INTERMEDIATE]          # (H, I)
        wff2 = wl_ref[l, WFF2, 0:INTERMEDIATE, 0:HIDDEN]          # (I, H)
        bl = bl_ref[l]                                            # (8, W_COLS)

        # Fused Q|K|V projection: one (B*S, H) @ (H, 3H) matmul.
        qkv = jnp.dot(h, wqkv, preferred_element_type=jnp.float32) + bl[BQKV:BQKV + 1, :]
        q = qkv[:, 0:HIDDEN]                                      # lane prefix (free)
        k = qkv[:, HIDDEN:2 * HIDDEN]
        v = qkv[:, 2 * HIDDEN:3 * HIDDEN]

        # Stack every (batch, head) query block along sublanes, with the head's
        # lanes selected by a VPU mask (zeros elsewhere).  (B*NH*S, H)
        q_ms = jnp.concatenate(
            [q[b * SEQ:(b + 1) * SEQ, :] * hm
             for b in range(BATCH) for hm in head_masks],
            axis=0)

        # ONE score matmul for all batches & heads (contract last dims -> no K^T).
        scores = jax.lax.dot_general(
            q_ms, k, (((1,), (1,)), ((), ())),
            preferred_element_type=jnp.float32) * scale + bias_full  # (B*NH*S, B*S)

        # Standard row-wise softmax (cross-batch columns are -1e4 -> exp == 0).
        m = jnp.max(scores, axis=-1, keepdims=True)
        p = jnp.exp(scores - m)
        p = p * pl.reciprocal(jnp.sum(p, axis=-1, keepdims=True), approx=True)

        # ONE P@V matmul for all batches & heads.
        pv = jnp.dot(p, v, preferred_element_type=jnp.float32)    # (B*NH*S, H)

        # Merge heads: pick the head's lanes from its row block and sum heads.
        ctx_blocks = []
        for b in range(BATCH):
            acc = None
            for hd in range(NUM_HEADS):
                r0 = (b * NUM_HEADS + hd) * SEQ
                blk = pv[r0:r0 + SEQ, :] * head_masks[hd]
                acc = blk if acc is None else acc + blk
            ctx_blocks.append(acc)
        ctx = jnp.concatenate(ctx_blocks, axis=0)                 # (B*S, H)

        # O-projection + residual + LayerNorm.
        attn = jnp.dot(ctx, wo, preferred_element_type=jnp.float32) + bl[BO:BO + 1, 0:HIDDEN]
        h = _layernorm(attn + h, bl[LN1G:LN1G + 1, 0:HIDDEN], bl[LN1B:LN1B + 1, 0:HIDDEN])

        # FF1 + GELU, FF2 + residual + LayerNorm.
        ff = _gelu(jnp.dot(h, wff1, preferred_element_type=jnp.float32)
                   + bl[BFF1:BFF1 + 1, 0:INTERMEDIATE])
        ff2 = jnp.dot(ff, wff2, preferred_element_type=jnp.float32) + bl[BFF2:BFF2 + 1, 0:HIDDEN]
        h = _layernorm(ff2 + h, bl[LN2G:LN2G + 1, 0:HIDDEN], bl[LN2B:LN2B + 1, 0:HIDDEN])

    # ---- pooler (first token -> dense -> tanh) + classification head ----
    first_tok = jnp.concatenate([h[b * SEQ:b * SEQ + 1, :] for b in range(BATCH)], axis=0)
    pooled = jnp.tanh(jnp.dot(first_tok, wh_ref[POOL_W],
                              preferred_element_type=jnp.float32)
                      + bh[POOL_B:POOL_B + 1, 0:HIDDEN])
    logits = jnp.dot(pooled, wh_ref[FC_W, :, 0:NUM_CLASSES],
                     preferred_element_type=jnp.float32) + bh[FC_B:FC_B + 1, 0:NUM_CLASSES]
    out_ref[...] = logits.astype(out_ref.dtype)


# --------------------------- parameter creation ----------------------------
def init_params(key):
    std = 0.02
    keys = iter(jax.random.split(key, 32))

    def nrm(shape):
        return jax.random.normal(next(keys), shape, jnp.float32) * std

    p = {}
    p["word_emb"] = nrm((VOCAB, HIDDEN))
    p["pos_emb"] = nrm((MAX_POS, HIDDEN))
    p["type_emb"] = nrm((TYPE_VOCAB, HIDDEN))

    w_layers = jnp.zeros((NUM_LAYERS, 4, W_ROWS, W_COLS), jnp.float32)
    b_layers = jnp.zeros((NUM_LAYERS, 8, W_COLS), jnp.float32)
    for l in range(NUM_LAYERS):
        wq, wk, wv = nrm((HIDDEN, HIDDEN)), nrm((HIDDEN, HIDDEN)), nrm((HIDDEN, HIDDEN))
        w_layers = w_layers.at[l, WQKV, 0:HIDDEN, 0:3 * HIDDEN].set(
            jnp.concatenate([wq, wk, wv], axis=1))
        w_layers = w_layers.at[l, WO, 0:HIDDEN, 0:HIDDEN].set(nrm((HIDDEN, HIDDEN)))
        w_layers = w_layers.at[l, WFF1, 0:HIDDEN, 0:INTERMEDIATE].set(nrm((HIDDEN, INTERMEDIATE)))
        w_layers = w_layers.at[l, WFF2, 0:INTERMEDIATE, 0:HIDDEN].set(nrm((INTERMEDIATE, HIDDEN)))
        # Biases / LN betas stay zero; LN gammas are ones.
        b_layers = b_layers.at[l, LN1G, 0:HIDDEN].set(1.0)
        b_layers = b_layers.at[l, LN2G, 0:HIDDEN].set(1.0)

    w_head = jnp.zeros((2, HIDDEN, HIDDEN), jnp.float32)
    w_head = w_head.at[POOL_W].set(nrm((HIDDEN, HIDDEN)))
    w_head = w_head.at[FC_W, :, 0:NUM_CLASSES].set(nrm((HIDDEN, NUM_CLASSES)))

    b_head = jnp.zeros((4, W_COLS), jnp.float32)
    b_head = b_head.at[EMB_LN_G, 0:HIDDEN].set(1.0)

    p.update(w_layers=w_layers, b_layers=b_layers, w_head=w_head, b_head=b_head)
    return p


# ------------------------------ model forward ------------------------------
def model_forward(params, input_ids, attention_mask):
    """Equivalent of Model.forward(x) with x[0]=input_ids, x[2]=attention_mask."""
    B, S = input_ids.shape

    # Embedding gathers stay in plain JAX glue (token_type_ids fixed to 0).
    positions = jnp.arange(S, dtype=jnp.int32)
    emb = (jnp.take(params["word_emb"], input_ids, axis=0)
           + params["pos_emb"][positions][None, :, :]
           + params["type_emb"][0][None, None, :])
    emb = emb.reshape(B * S, HIDDEN).astype(jnp.float32)

    # Attention bias for the stacked-(batch,head) score layout:
    # rows = (batch, head, query), cols = (batch, key).  Padding keys get -1e4,
    # cross-batch columns get -1e4 (kills them under the row-wise softmax).
    pad_bias = (1.0 - attention_mask.astype(jnp.float32)) * -10000.0     # (B, S)
    q_batch = jnp.repeat(jnp.arange(B), NUM_HEADS * S)
    k_batch = jnp.repeat(jnp.arange(B), S)
    same = (q_batch[:, None] == k_batch[None, :]).astype(jnp.float32)    # (B*NH*S, B*S)
    bias_full = same * pad_bias.reshape(1, B * S) + (1.0 - same) * (-10000.0)

    # Advisory cost estimate.
    def mm(m, k, n):
        return 2 * m * k * n
    per_layer = (mm(B * S, HIDDEN, 3 * HIDDEN)
                 + mm(B * NUM_HEADS * S, HIDDEN, B * S)
                 + mm(B * NUM_HEADS * S, B * S, HIDDEN)
                 + mm(B * S, HIDDEN, HIDDEN)
                 + mm(B * S, HIDDEN, INTERMEDIATE)
                 + mm(B * S, INTERMEDIATE, HIDDEN))
    flops = NUM_LAYERS * per_layer + mm(B, HIDDEN, HIDDEN) + mm(B, HIDDEN, NUM_CLASSES)
    transcend = NUM_LAYERS * (B * NUM_HEADS * S * B * S + B * S * INTERMEDIATE) + B * HIDDEN
    operands = (emb, bias_full, params["w_layers"], params["b_layers"],
                params["w_head"], params["b_head"])
    bytes_accessed = 4 * (sum(int(a.size) for a in operands) + B * NUM_CLASSES)

    vmem_spec = pl.BlockSpec(memory_space=pltpu.MemorySpace.VMEM)
    return pl.pallas_call(
        _bert_forward_kernel,
        out_shape=jax.ShapeDtypeStruct((B, NUM_CLASSES), jnp.float32),
        in_specs=[vmem_spec] * len(operands),
        out_specs=vmem_spec,
        cost_estimate=pl.CostEstimate(flops=flops, transcendentals=transcend,
                                      bytes_accessed=bytes_accessed),
    )(*operands)


# -------------------------- pure-JAX reference ------------------------------
def reference_forward(params, input_ids, attention_mask):
    B, S = input_ids.shape
    wl, blv = params["w_layers"], params["b_layers"]
    wh, bh = params["w_head"], params["b_head"]

    positions = jnp.arange(S, dtype=jnp.int32)
    emb = (params["word_emb"][input_ids] + params["pos_emb"][positions][None]
           + params["type_emb"][0][None, None, :])
    x = emb.reshape(B * S, HIDDEN).astype(jnp.float32)
    x = _layernorm(x, bh[EMB_LN_G, :HIDDEN], bh[EMB_LN_B, :HIDDEN])

    mask_bias = (1.0 - attention_mask.astype(jnp.float32)) * -10000.0    # (B, S)
    for l in range(NUM_LAYERS):
        wqkv = wl[l, WQKV, :HIDDEN, :]
        wo = wl[l, WO, :HIDDEN, :HIDDEN]
        wff1 = wl[l, WFF1, :HIDDEN, :INTERMEDIATE]
        wff2 = wl[l, WFF2, :INTERMEDIATE, :HIDDEN]
        qkv = x @ wqkv + blv[l, BQKV]
        q, k, v = qkv[:, :HIDDEN], qkv[:, HIDDEN:2 * HIDDEN], qkv[:, 2 * HIDDEN:]
        q = q.reshape(B, S, NUM_HEADS, HEAD_DIM).transpose(0, 2, 1, 3)
        k = k.reshape(B, S, NUM_HEADS, HEAD_DIM).transpose(0, 2, 1, 3)
        v = v.reshape(B, S, NUM_HEADS, HEAD_DIM).transpose(0, 2, 1, 3)
        s = jnp.einsum("bhqd,bhkd->bhqk", q, k) / (HEAD_DIM ** 0.5)
        s = s + mask_bias[:, None, None, :]
        p = jax.nn.softmax(s, axis=-1)
        ctx = jnp.einsum("bhqk,bhkd->bhqd", p, v).transpose(0, 2, 1, 3).reshape(B * S, HIDDEN)
        x = _layernorm(ctx @ wo + blv[l, BO, :HIDDEN] + x,
                       blv[l, LN1G, :HIDDEN], blv[l, LN1B, :HIDDEN])
        ff = _gelu(x @ wff1 + blv[l, BFF1, :INTERMEDIATE])
        x = _layernorm(ff @ wff2 + blv[l, BFF2, :HIDDEN] + x,
                       blv[l, LN2G, :HIDDEN], blv[l, LN2B, :HIDDEN])

    first = x.reshape(B, S, HIDDEN)[:, 0, :]
    pooled = jnp.tanh(first @ wh[POOL_W] + bh[POOL_B, :HIDDEN])
    return pooled @ wh[FC_W, :, :NUM_CLASSES] + bh[FC_B, :NUM_CLASSES]


# ---------------------------------- main -----------------------------------
if __name__ == "__main__":
    key = jax.random.PRNGKey(0)
    k_ids, k_params = jax.random.split(key)

    input_ids = jax.random.randint(k_ids, (BATCH, SEQ), 0, VOCAB, dtype=jnp.int32)
    # Simple ragged mask: last two tokens of batch element 1 are padding.
    attention_mask = jnp.ones((BATCH, SEQ), jnp.int32).at[1, -2:].set(0)

    params = init_params(k_params)

    logits = jax.block_until_ready(model_forward(params, input_ids, attention_mask))
    ref = jax.block_until_ready(reference_forward(params, input_ids, attention_mask))

    assert logits.shape == (BATCH, NUM_CLASSES)
    assert bool(jnp.all(jnp.isfinite(logits)))
    assert float(jnp.max(jnp.abs(logits - ref))) < 5e-3
    print("KERNEL_OK")
</pallas_src>

<mosaic_0001>
module attributes {stable_mosaic.version = 11 : i64} {
  func.func @_bert_forward_kernel(%arg0: memref<16x32xf32, #tpu.memory_space<vmem>>, %arg1: memref<32x16xf32, #tpu.memory_space<vmem>>, %arg2: memref<2x4x64x96xf32, #tpu.memory_space<vmem>>, %arg3: memref<2x8x96xf32, #tpu.memory_space<vmem>>, %arg4: memref<2x32x32xf32, #tpu.memory_space<vmem>>, %arg5: memref<4x96xf32, #tpu.memory_space<vmem>>, %arg6: memref<2x3xf32, #tpu.memory_space<vmem>>) attributes {dimension_semantics = [], scalar_prefetch = 0 : i64, scratch_operands = 0 : i64, tpu.core_type = #tpu.core_type<tc>} {
    %0 = tpu.iota {dimensions = array<i32: 1>} : vector<1x32xi32>
    %c0_i32 = arith.constant 0 : i32
    %1 = vector.broadcast %c0_i32 : i32 to vector<1x32xi32>
    %2 = arith.cmpi sge, %0, %1 : vector<1x32xi32>
    %c16_i32 = arith.constant 16 : i32
    %3 = vector.broadcast %c16_i32 : i32 to vector<1x32xi32>
    %4 = arith.cmpi slt, %0, %3 : vector<1x32xi32>
    %5 = arith.andi %2, %4 : vector<1x32xi1>
    %6 = arith.extui %5 : vector<1x32xi1> to vector<1x32xi32>
    %7 = arith.sitofp %6 : vector<1x32xi32> to vector<1x32xf32>
    %c16_i32_0 = arith.constant 16 : i32
    %8 = vector.broadcast %c16_i32_0 : i32 to vector<1x32xi32>
    %9 = arith.cmpi sge, %0, %8 : vector<1x32xi32>
    %c32_i32 = arith.constant 32 : i32
    %10 = vector.broadcast %c32_i32 : i32 to vector<1x32xi32>
    %11 = arith.cmpi slt, %0, %10 : vector<1x32xi32>
    %12 = arith.andi %9, %11 : vector<1x32xi1>
    %13 = arith.extui %12 : vector<1x32xi1> to vector<1x32xi32>
    %14 = arith.sitofp %13 : vector<1x32xi32> to vector<1x32xf32>
    %c0 = arith.constant 0 : index
    %c0_1 = arith.constant 0 : index
    %15 = vector.load %arg1[%c0, %c0_1] : memref<32x16xf32, #tpu.memory_space<vmem>>, vector<32x16xf32>
    %c0_2 = arith.constant 0 : index
    %c0_3 = arith.constant 0 : index
    %16 = vector.load %arg5[%c0_2, %c0_3] : memref<4x96xf32, #tpu.memory_space<vmem>>, vector<4x96xf32>
    %c0_4 = arith.constant 0 : index
    %c0_5 = arith.constant 0 : index
    %17 = vector.load %arg0[%c0_4, %c0_5] : memref<16x32xf32, #tpu.memory_space<vmem>>, vector<16x32xf32>
    %18 = vector.extract_strided_slice %16 {offsets = [0, 0], sizes = [1, 32], strides = [1, 1]} : vector<4x96xf32> to vector<1x32xf32>
    %19 = vector.extract_strided_slice %16 {offsets = [1, 0], sizes = [1, 32], strides = [1, 1]} : vector<4x96xf32> to vector<1x32xf32>
    %cst = arith.constant dense<0.000000e+00> : vector<16xf32>
    %20 = vector.multi_reduction <add>, %17, %cst [1] : vector<16x32xf32> to vector<16xf32>
    %21 = vector.shape_cast %20 : vector<16xf32> to vector<16x1xf32>
    %cst_6 = arith.constant 3.200000e+01 : f32
    %22 = vector.broadcast %cst_6 : f32 to vector<16x1xf32>
    %23 = arith.divf %21, %22 : vector<16x1xf32>
    %24 = vector.broadcast %23 : vector<16x1xf32> to vector<16x32xf32>
    %25 = arith.subf %17, %24 : vector<16x32xf32>
    %26 = arith.mulf %25, %25 : vector<16x32xf32>
    %cst_7 = arith.constant dense<0.000000e+00> : vector<16xf32>
    %27 = vector.multi_reduction <add>, %26, %cst_7 [1] : vector<16x32xf32> to vector<16xf32>
    %28 = vector.shape_cast %27 : vector<16xf32> to vector<16x1xf32>
    %cst_8 = arith.constant 3.200000e+01 : f32
    %29 = vector.broadcast %cst_8 : f32 to vector<16x1xf32>
    %30 = arith.divf %28, %29 : vector<16x1xf32>
    %cst_9 = arith.constant 9.99999996E-13 : f32
    %31 = vector.broadcast %cst_9 : f32 to vector<16x1xf32>
    %32 = arith.addf %30, %31 : vector<16x1xf32>
    %33 = math.rsqrt %32 : vector<16x1xf32>
    %34 = vector.broadcast %33 : vector<16x1xf32> to vector<16x32xf32>
    %35 = arith.mulf %25, %34 : vector<16x32xf32>
    %36 = vector.broadcast %18 : vector<1x32xf32> to vector<16x32xf32>
    %37 = arith.mulf %35, %36 : vector<16x32xf32>
    %38 = vector.broadcast %19 : vector<1x32xf32> to vector<16x32xf32>
    %39 = arith.addf %37, %38 : vector<16x32xf32>
    %c0_10 = arith.constant 0 : index
    %c0_11 = arith.constant 0 : index
    %c0_12 = arith.constant 0 : index
    %c0_13 = arith.constant 0 : index
    %40 = vector.load %arg2[%c0_10, %c0_11, %c0_12, %c0_13] : memref<2x4x64x96xf32, #tpu.memory_space<vmem>>, vector<1x1x32x96xf32>
    %41 = vector.shape_cast %40 : vector<1x1x32x96xf32> to vector<32x96xf32>
    %c0_14 = arith.constant 0 : index
    %c1 = arith.constant 1 : index
    %c0_15 = arith.constant 0 : index
    %c0_16 = arith.constant 0 : index
    %42 = vector.load %arg2[%c0_14, %c1, %c0_15, %c0_16] : memref<2x4x64x96xf32, #tpu.memory_space<vmem>>, vector<1x1x32x32xf32>
    %43 = vector.shape_cast %42 : vector<1x1x32x32xf32> to vector<32x32xf32>
    %c0_17 = arith.constant 0 : index
    %c2 = arith.constant 2 : index
    %c0_18 = arith.constant 0 : index
    %c0_19 = arith.constant 0 : index
    %44 = vector.load %arg2[%c0_17, %c2, %c0_18, %c0_19] : memref<2x4x64x96xf32, #tpu.memory_space<vmem>>, vector<1x1x32x64xf32>
    %45 = vector.shape_cast %44 : vector<1x1x32x64xf32> to vector<32x64xf32>
    %c0_20 = arith.constant 0 : index
    %c3 = arith.constant 3 : index
    %c0_21 = arith.constant 0 : index
    %c0_22 = arith.constant 0 : index
    %46 = vector.load %arg2[%c0_20, %c3, %c0_21, %c0_22] : memref<2x4x64x96xf32, #tpu.memory_space<vmem>>, vector<1x1x64x32xf32>
    %47 = vector.shape_cast %46 : vector<1x1x64x32xf32> to vector<64x32xf32>
    %c0_23 = arith.constant 0 : index
    %c0_24 = arith.constant 0 : index
    %c0_25 = arith.constant 0 : index
    %48 = vector.load %arg3[%c0_23, %c0_24, %c0_25] : memref<2x8x96xf32, #tpu.memory_space<vmem>>, vector<1x8x96xf32>
    %49 = vector.shape_cast %48 : vector<1x8x96xf32> to vector<8x96xf32>
    %cst_26 = arith.constant dense<0.000000e+00> : vector<16x96xf32>
    %50 = tpu.matmul %39, %41, %cst_26 {dimension_numbers = #tpu.dot_dimension_numbers<[1], [0], [0], [1], [0, 0, 1, 1], [], []>} : vector<16x32xf32>, vector<32x96xf32>, vector<16x96xf32> -> vector<16x96xf32>
    %51 = vector.extract_strided_slice %49 {offsets = [0, 0], sizes = [1, 96], strides = [1, 1]} : vector<8x96xf32> to vector<1x96xf32>
    %52 = vector.broadcast %51 : vector<1x96xf32> to vector<16x96xf32>
    %53 = arith.addf %50, %52 : vector<16x96xf32>
    %54 = vector.extract_strided_slice %53 {offsets = [0, 0], sizes = [16, 32], strides = [1, 1]} : vector<16x96xf32> to vector<16x32xf32>
    %55 = vector.extract_strided_slice %53 {offsets = [0, 32], sizes = [16, 32], strides = [1, 1]} : vector<16x96xf32> to vector<16x32xf32>
    %56 = vector.extract_strided_slice %53 {offsets = [0, 64], sizes = [16, 32], strides = [1, 1]} : vector<16x96xf32> to vector<16x32xf32>
    %57 = vector.extract_strided_slice %54 {offsets = [0, 0], sizes = [8, 32], strides = [1, 1]} : vector<16x32xf32> to vector<8x32xf32>
    %58 = vector.broadcast %7 : vector<1x32xf32> to vector<8x32xf32>
    %59 = arith.mulf %57, %58 : vector<8x32xf32>
    %60 = vector.extract_strided_slice %54 {offsets = [0, 0], sizes = [8, 32], strides = [1, 1]} : vector<16x32xf32> to vector<8x32xf32>
    %61 = vector.broadcast %14 : vector<1x32xf32> to vector<8x32xf32>
    %62 = arith.mulf %60, %61 : vector<8x32xf32>
    %63 = vector.extract_strided_slice %54 {offsets = [8, 0], sizes = [8, 32], strides = [1, 1]} : vector<16x32xf32> to vector<8x32xf32>
    %64 = vector.broadcast %7 : vector<1x32xf32> to vector<8x32xf32>
    %65 = arith.mulf %63, %64 : vector<8x32xf32>
    %66 = vector.extract_strided_slice %54 {offsets = [8, 0], sizes = [8, 32], strides = [1, 1]} : vector<16x32xf32> to vector<8x32xf32>
    %67 = vector.broadcast %14 : vector<1x32xf32> to vector<8x32xf32>
    %68 = arith.mulf %66, %67 : vector<8x32xf32>
    %69 = tpu.concatenate %59, %62, %65, %68 in 0 : vector<8x32xf32>, vector<8x32xf32>, vector<8x32xf32>, vector<8x32xf32> -> vector<32x32xf32>
    %cst_27 = arith.constant dense<0.000000e+00> : vector<32x16xf32>
    %70 = tpu.matmul %69, %55, %cst_27 {dimension_numbers = #tpu.dot_dimension_numbers<[1], [1], [0], [0], [0, 0, 1, 0], [], []>} : vector<32x32xf32>, vector<16x32xf32>, vector<32x16xf32> -> vector<32x16xf32>
    %cst_28 = arith.constant 2.500000e-01 : f32
    %71 = vector.broadcast %cst_28 : f32 to vector<32x16xf32>
    %72 = arith.mulf %70, %71 : vector<32x16xf32>
    %73 = arith.addf %72, %15 : vector<32x16xf32>
    %cst_29 = arith.constant dense<0xFF800000> : vector<32xf32>
    %74 = vector.multi_reduction <maximumf>, %73, %cst_29 [1] : vector<32x16xf32> to vector<32xf32>
    %75 = vector.shape_cast %74 : vector<32xf32> to vector<32x1xf32>
    %76 = vector.broadcast %75 : vector<32x1xf32> to vector<32x16xf32>
    %77 = arith.subf %73, %76 : vector<32x16xf32>
    %78 = math.exp %77 : vector<32x16xf32>
    %cst_30 = arith.constant dense<0.000000e+00> : vector<32xf32>
    %79 = vector.multi_reduction <add>, %78, %cst_30 [1] : vector<32x16xf32> to vector<32xf32>
    %80 = vector.shape_cast %79 : vector<32xf32> to vector<32x1xf32>
    %81 = tpu.reciprocal %80 {approx = true} : vector<32x1xf32> -> vector<32x1xf32>
    %82 = vector.broadcast %81 : vector<32x1xf32> to vector<32x16xf32>
    %83 = arith.mulf %78, %82 : vector<32x16xf32>
    %cst_31 = arith.constant dense<0.000000e+00> : vector<32x32xf32>
    %84 = tpu.matmul %83, %56, %cst_31 {dimension_numbers = #tpu.dot_dimension_numbers<[1], [0], [0], [1], [0, 0, 1, 1], [], []>} : vector<32x16xf32>, vector<16x32xf32>, vector<32x32xf32> -> vector<32x32xf32>
    %85 = vector.extract_strided_slice %84 {offsets = [0, 0], sizes = [8, 32], strides = [1, 1]} : vector<32x32xf32> to vector<8x32xf32>
    %86 = vector.broadcast %7 : vector<1x32xf32> to vector<8x32xf32>
    %87 = arith.mulf %85, %86 : vector<8x32xf32>
    %88 = vector.extract_strided_slice %84 {offsets = [8, 0], sizes = [8, 32], strides = [1, 1]} : vector<32x32xf32> to vector<8x32xf32>
    %89 = vector.broadcast %14 : vector<1x32xf32> to vector<8x32xf32>
    %90 = arith.mulf %88, %89 : vector<8x32xf32>
    %91 = arith.addf %87, %90 : vector<8x32xf32>
    %92 = vector.extract_strided_slice %84 {offsets = [16, 0], sizes = [8, 32], strides = [1, 1]} : vector<32x32xf32> to vector<8x32xf32>
    %93 = vector.broadcast %7 : vector<1x32xf32> to vector<8x32xf32>
    %94 = arith.mulf %92, %93 : vector<8x32xf32>
    %95 = vector.extract_strided_slice %84 {offsets = [24, 0], sizes = [8, 32], strides = [1, 1]} : vector<32x32xf32> to vector<8x32xf32>
    %96 = vector.broadcast %14 : vector<1x32xf32> to vector<8x32xf32>
    %97 = arith.mulf %95, %96 : vector<8x32xf32>
    %98 = arith.addf %94, %97 : vector<8x32xf32>
    %99 = tpu.concatenate %91, %98 in 0 : vector<8x32xf32>, vector<8x32xf32> -> vector<16x32xf32>
    %cst_32 = arith.constant dense<0.000000e+00> : vector<16x32xf32>
    %100 = tpu.matmul %99, %43, %cst_32 {dimension_numbers = #tpu.dot_dimension_numbers<[1], [0], [0], [1], [0, 0, 1, 1], [], []>} : vector<16x32xf32>, vector<32x32xf32>, vector<16x32xf32> -> vector<16x32xf32>
    %101 = vector.extract_strided_slice %49 {offsets = [1, 0], sizes = [1, 32], strides = [1, 1]} : vector<8x96xf32> to vector<1x32xf32>
    %102 = vector.broadcast %101 : vector<1x32xf32> to vector<16x32xf32>
    %103 = arith.addf %100, %102 : vector<16x32xf32>
    %104 = arith.addf %103, %39 : vector<16x32xf32>
    %105 = vector.extract_strided_slice %49 {offsets = [2, 0], sizes = [1, 32], strides = [1, 1]} : vector<8x96xf32> to vector<1x32xf32>
    %106 = vector.extract_strided_slice %49 {offsets = [3, 0], sizes = [1, 32], strides = [1, 1]} : vector<8x96xf32> to vector<1x32xf32>
    %cst_33 = arith.constant dense<0.000000e+00> : vector<16xf32>
    %107 = vector.multi_reduction <add>, %104, %cst_33 [1] : vector<16x32xf32> to vector<16xf32>
    %108 = vector.shape_cast %107 : vector<16xf32> to vector<16x1xf32>
    %cst_34 = arith.constant 3.200000e+01 : f32
    %109 = vector.broadcast %cst_34 : f32 to vector<16x1xf32>
    %110 = arith.divf %108, %109 : vector<16x1xf32>
    %111 = vector.broadcast %110 : vector<16x1xf32> to vector<16x32xf32>
    %112 = arith.subf %104, %111 : vector<16x32xf32>
    %113 = arith.mulf %112, %112 : vector<16x32xf32>
    %cst_35 = arith.constant dense<0.000000e+00> : vector<16xf32>
    %114 = vector.multi_reduction <add>, %113, %cst_35 [1] : vector<16x32xf32> to vector<16xf32>
    %115 = vector.shape_cast %114 : vector<16xf32> to vector<16x1xf32>
    %cst_36 = arith.constant 3.200000e+01 : f32
    %116 = vector.broadcast %cst_36 : f32 to vector<16x1xf32>
    %117 = arith.divf %115, %116 : vector<16x1xf32>
    %cst_37 = arith.constant 9.99999996E-13 : f32
    %118 = vector.broadcast %cst_37 : f32 to vector<16x1xf32>
    %119 = arith.addf %117, %118 : vector<16x1xf32>
    %120 = math.rsqrt %119 : vector<16x1xf32>
    %121 = vector.broadcast %120 : vector<16x1xf32> to vector<16x32xf32>
    %122 = arith.mulf %112, %121 : vector<16x32xf32>
    %123 = vector.broadcast %105 : vector<1x32xf32> to vector<16x32xf32>
    %124 = arith.mulf %122, %123 : vector<16x32xf32>
    %125 = vector.broadcast %106 : vector<1x32xf32> to vector<16x32xf32>
    %126 = arith.addf %124, %125 : vector<16x32xf32>
    %cst_38 = arith.constant dense<0.000000e+00> : vector<16x64xf32>
    %127 = tpu.matmul %126, %45, %cst_38 {dimension_numbers = #tpu.dot_dimension_numbers<[1], [0], [0], [1], [0, 0, 1, 1], [], []>} : vector<16x32xf32>, vector<32x64xf32>, vector<16x64xf32> -> vector<16x64xf32>
    %128 = vector.extract_strided_slice %49 {offsets = [4, 0], sizes = [1, 64], strides = [1, 1]} : vector<8x96xf32> to vector<1x64xf32>
    %129 = vector.broadcast %128 : vector<1x64xf32> to vector<16x64xf32>
    %130 = arith.addf %127, %129 : vector<16x64xf32>
    %cst_39 = arith.constant 5.000000e-01 : f32
    %131 = vector.broadcast %cst_39 : f32 to vector<16x64xf32>
    %132 = arith.mulf %131, %130 : vector<16x64xf32>
    %cst_40 = arith.constant 4.471500e-02 : f32
    %133 = vector.broadcast %cst_40 : f32 to vector<16x64xf32>
    %134 = arith.mulf %133, %130 : vector<16x64xf32>
    %135 = arith.mulf %134, %130 : vector<16x64xf32>
    %136 = arith.mulf %135, %130 : vector<16x64xf32>
    %137 = arith.addf %130, %136 : vector<16x64xf32>
    %cst_41 = arith.constant 0.797884583 : f32
    %138 = vector.broadcast %cst_41 : f32 to vector<16x64xf32>
    %139 = arith.mulf %138, %137 : vector<16x64xf32>
    %140 = math.tanh %139 : vector<16x64xf32>
    %cst_42 = arith.constant 1.000000e+00 : f32
    %141 = vector.broadcast %cst_42 : f32 to vector<16x64xf32>
    %142 = arith.addf %141, %140 : vector<16x64xf32>
    %143 = arith.mulf %132, %142 : vector<16x64xf32>
    %cst_43 = arith.constant dense<0.000000e+00> : vector<16x32xf32>
    %144 = tpu.matmul %143, %47, %cst_43 {dimension_numbers = #tpu.dot_dimension_numbers<[1], [0], [0], [1], [0, 0, 1, 1], [], []>} : vector<16x64xf32>, vector<64x32xf32>, vector<16x32xf32> -> vector<16x32xf32>
    %145 = vector.extract_strided_slice %49 {offsets = [5, 0], sizes = [1, 32], strides = [1, 1]} : vector<8x96xf32> to vector<1x32xf32>
    %146 = vector.broadcast %145 : vector<1x32xf32> to vector<16x32xf32>
    %147 = arith.addf %144, %146 : vector<16x32xf32>
    %148 = arith.addf %147, %126 : vector<16x32xf32>
    %149 = vector.extract_strided_slice %49 {offsets = [6, 0], sizes = [1, 32], strides = [1, 1]} : vector<8x96xf32> to vector<1x32xf32>
    %150 = vector.extract_strided_slice %49 {offsets = [7, 0], sizes = [1, 32], strides = [1, 1]} : vector<8x96xf32> to vector<1x32xf32>
    %cst_44 = arith.constant dense<0.000000e+00> : vector<16xf32>
    %151 = vector.multi_reduction <add>, %148, %cst_44 [1] : vector<16x32xf32> to vector<16xf32>
    %152 = vector.shape_cast %151 : vector<16xf32> to vector<16x1xf32>
    %cst_45 = arith.constant 3.200000e+01 : f32
    %153 = vector.broadcast %cst_45 : f32 to vector<16x1xf32>
    %154 = arith.divf %152, %153 : vector<16x1xf32>
    %155 = vector.broadcast %154 : vector<16x1xf32> to vector<16x32xf32>
    %156 = arith.subf %148, %155 : vector<16x32xf32>
    %157 = arith.mulf %156, %156 : vector<16x32xf32>
    %cst_46 = arith.constant dense<0.000000e+00> : vector<16xf32>
    %158 = vector.multi_reduction <add>, %157, %cst_46 [1] : vector<16x32xf32> to vector<16xf32>
    %159 = vector.shape_cast %158 : vector<16xf32> to vector<16x1xf32>
    %cst_47 = arith.constant 3.200000e+01 : f32
    %160 = vector.broadcast %cst_47 : f32 to vector<16x1xf32>
    %161 = arith.divf %159, %160 : vector<16x1xf32>
    %cst_48 = arith.constant 9.99999996E-13 : f32
    %162 = vector.broadcast %cst_48 : f32 to vector<16x1xf32>
    %163 = arith.addf %161, %162 : vector<16x1xf32>
    %164 = math.rsqrt %163 : vector<16x1xf32>
    %165 = vector.broadcast %164 : vector<16x1xf32> to vector<16x32xf32>
    %166 = arith.mulf %156, %165 : vector<16x32xf32>
    %167 = vector.broadcast %149 : vector<1x32xf32> to vector<16x32xf32>
    %168 = arith.mulf %166, %167 : vector<16x32xf32>
    %169 = vector.broadcast %150 : vector<1x32xf32> to vector<16x32xf32>
    %170 = arith.addf %168, %169 : vector<16x32xf32>
    %c1_49 = arith.constant 1 : index
    %c0_50 = arith.constant 0 : index
    %c0_51 = arith.constant 0 : index
    %c0_52 = arith.constant 0 : index
    %171 = vector.load %arg2[%c1_49, %c0_50, %c0_51, %c0_52] : memref<2x4x64x96xf32, #tpu.memory_space<vmem>>, vector<1x1x32x96xf32>
    %172 = vector.shape_cast %171 : vector<1x1x32x96xf32> to vector<32x96xf32>
    %c1_53 = arith.constant 1 : index
    %c1_54 = arith.constant 1 : index
    %c0_55 = arith.constant 0 : index
    %c0_56 = arith.constant 0 : index
    %173 = vector.load %arg2[%c1_53, %c1_54, %c0_55, %c0_56] : memref<2x4x64x96xf32, #tpu.memory_space<vmem>>, vector<1x1x32x32xf32>
    %174 = vector.shape_cast %173 : vector<1x1x32x32xf32> to vector<32x32xf32>
    %c1_57 = arith.constant 1 : index
    %c2_58 = arith.constant 2 : index
    %c0_59 = arith.constant 0 : index
    %c0_60 = arith.constant 0 : index
    %175 = vector.load %arg2[%c1_57, %c2_58, %c0_59, %c0_60] : memref<2x4x64x96xf32, #tpu.memory_space<vmem>>, vector<1x1x32x64xf32>
    %176 = vector.shape_cast %175 : vector<1x1x32x64xf32> to vector<32x64xf32>
    %c1_61 = arith.constant 1 : index
    %c3_62 = arith.constant 3 : index
    %c0_63 = arith.constant 0 : index
    %c0_64 = arith.constant 0 : index
    %177 = vector.load %arg2[%c1_61, %c3_62, %c0_63, %c0_64] : memref<2x4x64x96xf32, #tpu.memory_space<vmem>>, vector<1x1x64x32xf32>
    %178 = vector.shape_cast %177 : vector<1x1x64x32xf32> to vector<64x32xf32>
    %c1_65 = arith.constant 1 : index
    %c0_66 = arith.constant 0 : index
    %c0_67 = arith.constant 0 : index
    %179 = vector.load %arg3[%c1_65, %c0_66, %c0_67] : memref<2x8x96xf32, #tpu.memory_space<vmem>>, vector<1x8x96xf32>
    %180 = vector.shape_cast %179 : vector<1x8x96xf32> to vector<8x96xf32>
    %cst_68 = arith.constant dense<0.000000e+00> : vector<16x96xf32>
    %181 = tpu.matmul %170, %172, %cst_68 {dimension_numbers = #tpu.dot_dimension_numbers<[1], [0], [0], [1], [0, 0, 1, 1], [], []>} : vector<16x32xf32>, vector<32x96xf32>, vector<16x96xf32> -> vector<16x96xf32>
    %182 = vector.extract_strided_slice %180 {offsets = [0, 0], sizes = [1, 96], strides = [1, 1]} : vector<8x96xf32> to vector<1x96xf32>
    %183 = vector.broadcast %182 : vector<1x96xf32> to vector<16x96xf32>
    %184 = arith.addf %181, %183 : vector<16x96xf32>
    %185 = vector.extract_strided_slice %184 {offsets = [0, 0], sizes = [16, 32], strides = [1, 1]} : vector<16x96xf32> to vector<16x32xf32>
    %186 = vector.extract_strided_slice %184 {offsets = [0, 32], sizes = [16, 32], strides = [1, 1]} : vector<16x96xf32> to vector<16x32xf32>
    %187 = vector.extract_strided_slice %184 {offsets = [0, 64], sizes = [16, 32], strides = [1, 1]} : vector<16x96xf32> to vector<16x32xf32>
    %188 = vector.extract_strided_slice %185 {offsets = [0, 0], sizes = [8, 32], strides = [1, 1]} : vector<16x32xf32> to vector<8x32xf32>
    %189 = vector.broadcast %7 : vector<1x32xf32> to vector<8x32xf32>
    %190 = arith.mulf %188, %189 : vector<8x32xf32>
    %191 = vector.extract_strided_slice %185 {offsets = [0, 0], sizes = [8, 32], strides = [1, 1]} : vector<16x32xf32> to vector<8x32xf32>
    %192 = vector.broadcast %14 : vector<1x32xf32> to vector<8x32xf32>
    %193 = arith.mulf %191, %192 : vector<8x32xf32>
    %194 = vector.extract_strided_slice %185 {offsets = [8, 0], sizes = [8, 32], strides = [1, 1]} : vector<16x32xf32> to vector<8x32xf32>
    %195 = vector.broadcast %7 : vector<1x32xf32> to vector<8x32xf32>
    %196 = arith.mulf %194, %195 : vector<8x32xf32>
    %197 = vector.extract_strided_slice %185 {offsets = [8, 0], sizes = [8, 32], strides = [1, 1]} : vector<16x32xf32> to vector<8x32xf32>
    %198 = vector.broadcast %14 : vector<1x32xf32> to vector<8x32xf32>
    %199 = arith.mulf %197, %198 : vector<8x32xf32>
    %200 = tpu.concatenate %190, %193, %196, %199 in 0 : vector<8x32xf32>, vector<8x32xf32>, vector<8x32xf32>, vector<8x32xf32> -> vector<32x32xf32>
    %cst_69 = arith.constant dense<0.000000e+00> : vector<32x16xf32>
    %201 = tpu.matmul %200, %186, %cst_69 {dimension_numbers = #tpu.dot_dimension_numbers<[1], [1], [0], [0], [0, 0, 1, 0], [], []>} : vector<32x32xf32>, vector<16x32xf32>, vector<32x16xf32> -> vector<32x16xf32>
    %cst_70 = arith.constant 2.500000e-01 : f32
    %202 = vector.broadcast %cst_70 : f32 to vector<32x16xf32>
    %203 = arith.mulf %201, %202 : vector<32x16xf32>
    %204 = arith.addf %203, %15 : vector<32x16xf32>
    %cst_71 = arith.constant dense<0xFF800000> : vector<32xf32>
    %205 = vector.multi_reduction <maximumf>, %204, %cst_71 [1] : vector<32x16xf32> to vector<32xf32>
    %206 = vector.shape_cast %205 : vector<32xf32> to vector<32x1xf32>
    %207 = vector.broadcast %206 : vector<32x1xf32> to vector<32x16xf32>
    %208 = arith.subf %204, %207 : vector<32x16xf32>
    %209 = math.exp %208 : vector<32x16xf32>
    %cst_72 = arith.constant dense<0.000000e+00> : vector<32xf32>
    %210 = vector.multi_reduction <add>, %209, %cst_72 [1] : vector<32x16xf32> to vector<32xf32>
    %211 = vector.shape_cast %210 : vector<32xf32> to vector<32x1xf32>
    %212 = tpu.reciprocal %211 {approx = true} : vector<32x1xf32> -> vector<32x1xf32>
    %213 = vector.broadcast %212 : vector<32x1xf32> to vector<32x16xf32>
    %214 = arith.mulf %209, %213 : vector<32x16xf32>
    %cst_73 = arith.constant dense<0.000000e+00> : vector<32x32xf32>
    %215 = tpu.matmul %214, %187, %cst_73 {dimension_numbers = #tpu.dot_dimension_numbers<[1], [0], [0], [1], [0, 0, 1, 1], [], []>} : vector<32x16xf32>, vector<16x32xf32>, vector<32x32xf32> -> vector<32x32xf32>
    %216 = vector.extract_strided_slice %215 {offsets = [0, 0], sizes = [8, 32], strides = [1, 1]} : vector<32x32xf32> to vector<8x32xf32>
    %217 = vector.broadcast %7 : vector<1x32xf32> to vector<8x32xf32>
    %218 = arith.mulf %216, %217 : vector<8x32xf32>
    %219 = vector.extract_strided_slice %215 {offsets = [8, 0], sizes = [8, 32], strides = [1, 1]} : vector<32x32xf32> to vector<8x32xf32>
    %220 = vector.broadcast %14 : vector<1x32xf32> to vector<8x32xf32>
    %221 = arith.mulf %219, %220 : vector<8x32xf32>
    %222 = arith.addf %218, %221 : vector<8x32xf32>
    %223 = vector.extract_strided_slice %215 {offsets = [16, 0], sizes = [8, 32], strides = [1, 1]} : vector<32x32xf32> to vector<8x32xf32>
    %224 = vector.broadcast %7 : vector<1x32xf32> to vector<8x32xf32>
    %225 = arith.mulf %223, %224 : vector<8x32xf32>
    %226 = vector.extract_strided_slice %215 {offsets = [24, 0], sizes = [8, 32], strides = [1, 1]} : vector<32x32xf32> to vector<8x32xf32>
    %227 = vector.broadcast %14 : vector<1x32xf32> to vector<8x32xf32>
    %228 = arith.mulf %226, %227 : vector<8x32xf32>
    %229 = arith.addf %225, %228 : vector<8x32xf32>
    %230 = tpu.concatenate %222, %229 in 0 : vector<8x32xf32>, vector<8x32xf32> -> vector<16x32xf32>
    %cst_74 = arith.constant dense<0.000000e+00> : vector<16x32xf32>
    %231 = tpu.matmul %230, %174, %cst_74 {dimension_numbers = #tpu.dot_dimension_numbers<[1], [0], [0], [1], [0, 0, 1, 1], [], []>} : vector<16x32xf32>, vector<32x32xf32>, vector<16x32xf32> -> vector<16x32xf32>
    %232 = vector.extract_strided_slice %180 {offsets = [1, 0], sizes = [1, 32], strides = [1, 1]} : vector<8x96xf32> to vector<1x32xf32>
    %233 = vector.broadcast %232 : vector<1x32xf32> to vector<16x32xf32>
    %234 = arith.addf %231, %233 : vector<16x32xf32>
    %235 = arith.addf %234, %170 : vector<16x32xf32>
    %236 = vector.extract_strided_slice %180 {offsets = [2, 0], sizes = [1, 32], strides = [1, 1]} : vector<8x96xf32> to vector<1x32xf32>
    %237 = vector.extract_strided_slice %180 {offsets = [3, 0], sizes = [1, 32], strides = [1, 1]} : vector<8x96xf32> to vector<1x32xf32>
    %cst_75 = arith.constant dense<0.000000e+00> : vector<16xf32>
    %238 = vector.multi_reduction <add>, %235, %cst_75 [1] : vector<16x32xf32> to vector<16xf32>
    %239 = vector.shape_cast %238 : vector<16xf32> to vector<16x1xf32>
    %cst_76 = arith.constant 3.200000e+01 : f32
    %240 = vector.broadcast %cst_76 : f32 to vector<16x1xf32>
    %241 = arith.divf %239, %240 : vector<16x1xf32>
    %242 = vector.broadcast %241 : vector<16x1xf32> to vector<16x32xf32>
    %243 = arith.subf %235, %242 : vector<16x32xf32>
    %244 = arith.mulf %243, %243 : vector<16x32xf32>
    %cst_77 = arith.constant dense<0.000000e+00> : vector<16xf32>
    %245 = vector.multi_reduction <add>, %244, %cst_77 [1] : vector<16x32xf32> to vector<16xf32>
    %246 = vector.shape_cast %245 : vector<16xf32> to vector<16x1xf32>
    %cst_78 = arith.constant 3.200000e+01 : f32
    %247 = vector.broadcast %cst_78 : f32 to vector<16x1xf32>
    %248 = arith.divf %246, %247 : vector<16x1xf32>
    %cst_79 = arith.constant 9.99999996E-13 : f32
    %249 = vector.broadcast %cst_79 : f32 to vector<16x1xf32>
    %250 = arith.addf %248, %249 : vector<16x1xf32>
    %251 = math.rsqrt %250 : vector<16x1xf32>
    %252 = vector.broadcast %251 : vector<16x1xf32> to vector<16x32xf32>
    %253 = arith.mulf %243, %252 : vector<16x32xf32>
    %254 = vector.broadcast %236 : vector<1x32xf32> to vector<16x32xf32>
    %255 = arith.mulf %253, %254 : vector<16x32xf32>
    %256 = vector.broadcast %237 : vector<1x32xf32> to vector<16x32xf32>
    %257 = arith.addf %255, %256 : vector<16x32xf32>
    %cst_80 = arith.constant dense<0.000000e+00> : vector<16x64xf32>
    %258 = tpu.matmul %257, %176, %cst_80 {dimension_numbers = #tpu.dot_dimension_numbers<[1], [0], [0], [1], [0, 0, 1, 1], [], []>} : vector<16x32xf32>, vector<32x64xf32>, vector<16x64xf32> -> vector<16x64xf32>
    %259 = vector.extract_strided_slice %180 {offsets = [4, 0], sizes = [1, 64], strides = [1, 1]} : vector<8x96xf32> to vector<1x64xf32>
    %260 = vector.broadcast %259 : vector<1x64xf32> to vector<16x64xf32>
    %261 = arith.addf %258, %260 : vector<16x64xf32>
    %cst_81 = arith.constant 5.000000e-01 : f32
    %262 = vector.broadcast %cst_81 : f32 to vector<16x64xf32>
    %263 = arith.mulf %262, %261 : vector<16x64xf32>
    %cst_82 = arith.constant 4.471500e-02 : f32
    %264 = vector.broadcast %cst_82 : f32 to vector<16x64xf32>
    %265 = arith.mulf %264, %261 : vector<16x64xf32>
    %266 = arith.mulf %265, %261 : vector<16x64xf32>
    %267 = arith.mulf %266, %261 : vector<16x64xf32>
    %268 = arith.addf %261, %267 : vector<16x64xf32>
    %cst_83 = arith.constant 0.797884583 : f32
    %269 = vector.broadcast %cst_83 : f32 to vector<16x64xf32>
    %270 = arith.mulf %269, %268 : vector<16x64xf32>
    %271 = math.tanh %270 : vector<16x64xf32>
    %cst_84 = arith.constant 1.000000e+00 : f32
    %272 = vector.broadcast %cst_84 : f32 to vector<16x64xf32>
    %273 = arith.addf %272, %271 : vector<16x64xf32>
    %274 = arith.mulf %263, %273 : vector<16x64xf32>
    %cst_85 = arith.constant dense<0.000000e+00> : vector<16x32xf32>
    %275 = tpu.matmul %274, %178, %cst_85 {dimension_numbers = #tpu.dot_dimension_numbers<[1], [0], [0], [1], [0, 0, 1, 1], [], []>} : vector<16x64xf32>, vector<64x32xf32>, vector<16x32xf32> -> vector<16x32xf32>
    %276 = vector.extract_strided_slice %180 {offsets = [5, 0], sizes = [1, 32], strides = [1, 1]} : vector<8x96xf32> to vector<1x32xf32>
    %277 = vector.broadcast %276 : vector<1x32xf32> to vector<16x32xf32>
    %278 = arith.addf %275, %277 : vector<16x32xf32>
    %279 = arith.addf %278, %257 : vector<16x32xf32>
    %280 = vector.extract_strided_slice %180 {offsets = [6, 0], sizes = [1, 32], strides = [1, 1]} : vector<8x96xf32> to vector<1x32xf32>
    %281 = vector.extract_strided_slice %180 {offsets = [7, 0], sizes = [1, 32], strides = [1, 1]} : vector<8x96xf32> to vector<1x32xf32>
    %cst_86 = arith.constant dense<0.000000e+00> : vector<16xf32>
    %282 = vector.multi_reduction <add>, %279, %cst_86 [1] : vector<16x32xf32> to vector<16xf32>
    %283 = vector.shape_cast %282 : vector<16xf32> to vector<16x1xf32>
    %cst_87 = arith.constant 3.200000e+01 : f32
    %284 = vector.broadcast %cst_87 : f32 to vector<16x1xf32>
    %285 = arith.divf %283, %284 : vector<16x1xf32>
    %286 = vector.broadcast %285 : vector<16x1xf32> to vector<16x32xf32>
    %287 = arith.subf %279, %286 : vector<16x32xf32>
    %288 = arith.mulf %287, %287 : vector<16x32xf32>
    %cst_88 = arith.constant dense<0.000000e+00> : vector<16xf32>
    %289 = vector.multi_reduction <add>, %288, %cst_88 [1] : vector<16x32xf32> to vector<16xf32>
    %290 = vector.shape_cast %289 : vector<16xf32> to vector<16x1xf32>
    %cst_89 = arith.constant 3.200000e+01 : f32
    %291 = vector.broadcast %cst_89 : f32 to vector<16x1xf32>
    %292 = arith.divf %290, %291 : vector<16x1xf32>
    %cst_90 = arith.constant 9.99999996E-13 : f32
    %293 = vector.broadcast %cst_90 : f32 to vector<16x1xf32>
    %294 = arith.addf %292, %293 : vector<16x1xf32>
    %295 = math.rsqrt %294 : vector<16x1xf32>
    %296 = vector.broadcast %295 : vector<16x1xf32> to vector<16x32xf32>
    %297 = arith.mulf %287, %296 : vector<16x32xf32>
    %298 = vector.broadcast %280 : vector<1x32xf32> to vector<16x32xf32>
    %299 = arith.mulf %297, %298 : vector<16x32xf32>
    %300 = vector.broadcast %281 : vector<1x32xf32> to vector<16x32xf32>
    %301 = arith.addf %299, %300 : vector<16x32xf32>
    %302 = vector.extract_strided_slice %301 {offsets = [0, 0], sizes = [1, 32], strides = [1, 1]} : vector<16x32xf32> to vector<1x32xf32>
    %303 = vector.extract_strided_slice %301 {offsets = [8, 0], sizes = [1, 32], strides = [1, 1]} : vector<16x32xf32> to vector<1x32xf32>
    %304 = tpu.concatenate %302, %303 in 0 : vector<1x32xf32>, vector<1x32xf32> -> vector<2x32xf32>
    %c0_91 = arith.constant 0 : index
    %c0_92 = arith.constant 0 : index
    %c0_93 = arith.constant 0 : index
    %305 = vector.load %arg4[%c0_91, %c0_92, %c0_93] : memref<2x32x32xf32, #tpu.memory_space<vmem>>, vector<1x32x32xf32>
    %306 = vector.shape_cast %305 : vector<1x32x32xf32> to vector<32x32xf32>
    %cst_94 = arith.constant dense<0.000000e+00> : vector<2x32xf32>
    %307 = tpu.matmul %304, %306, %cst_94 {dimension_numbers = #tpu.dot_dimension_numbers<[1], [0], [0], [1], [0, 0, 1, 1], [], []>} : vector<2x32xf32>, vector<32x32xf32>, vector<2x32xf32> -> vector<2x32xf32>
    %308 = vector.extract_strided_slice %16 {offsets = [2, 0], sizes = [1, 32], strides = [1, 1]} : vector<4x96xf32> to vector<1x32xf32>
    %309 = vector.broadcast %308 : vector<1x32xf32> to vector<2x32xf32>
    %310 = arith.addf %307, %309 : vector<2x32xf32>
    %311 = math.tanh %310 : vector<2x32xf32>
    %c1_95 = arith.constant 1 : index
    %c0_96 = arith.constant 0 : index
    %c0_97 = arith.constant 0 : index
    %312 = vector.load %arg4[%c1_95, %c0_96, %c0_97] : memref<2x32x32xf32, #tpu.memory_space<vmem>>, vector<1x32x3xf32>
    %313 = vector.shape_cast %312 : vector<1x32x3xf32> to vector<32x3xf32>
    %cst_98 = arith.constant dense<0.000000e+00> : vector<2x3xf32>
    %314 = tpu.matmul %311, %313, %cst_98 {dimension_numbers = #tpu.dot_dimension_numbers<[1], [0], [0], [1], [0, 0, 1, 1], [], []>} : vector<2x32xf32>, vector<32x3xf32>, vector<2x3xf32> -> vector<2x3xf32>
    %315 = vector.extract_strided_slice %16 {offsets = [3, 0], sizes = [1, 3], strides = [1, 1]} : vector<4x96xf32> to vector<1x3xf32>
    %316 = vector.broadcast %315 : vector<1x3xf32> to vector<2x3xf32>
    %317 = arith.addf %314, %316 : vector<2x3xf32>
    %c0_99 = arith.constant 0 : index
    %c0_100 = arith.constant 0 : index
    %318 = vector.load %arg6[%c0_99, %c0_100] : memref<2x3xf32, #tpu.memory_space<vmem>>, vector<2x3xf32>
    tpu.vector_store %arg6[%c0_99, %c0_100], %317 {strides = array<i32>} : memref<2x3xf32, #tpu.memory_space<vmem>>, vector<2x3xf32>,
    return
  }
}

</mosaic_0001>

<llo_original>
// kernel: tpu_custom_call.1
$region0: #{tpu_custom_call.1}
  #allocation0 [shape = 'u32[]', space=smem, size = 0x4, offset = 0x4, fixed_abs, tag = 'smem constant byte address 0x4 - core index']
  #allocation1 [shape = 'u32[144,128]{1,0:T(1,128)}', space=vmem, size = 0x12000, scoped, tag = 'internal scratch']
  %s0 = inlined_call_operand.vmem [shape: f32[16,32], index: 0, kind: input, shape index: {}]
  %s1 = inlined_call_operand.vmem [shape: f32[32,16], index: 1, kind: input, shape index: {}]
  %s2 = inlined_call_operand.hbm [shape: f32[2,4,64,96], index: 2, kind: input, shape index: {}]
  %s3 = inlined_call_operand.vmem [shape: f32[2,8,96], index: 3, kind: input, shape index: {}]
  %s4 = inlined_call_operand.hbm [shape: f32[2,32,32], index: 4, kind: input, shape index: {}]
  %s5 = inlined_call_operand.vmem [shape: f32[4,96], index: 5, kind: input, shape index: {}]
  %s6 = inlined_call_operand.hbm [shape: f32[2,3], index: 6, kind: output, shape index: {}]
  %s7 = sld [smem:[#allocation0]]
  $region42: #{tpu_custom_call.1} parent=0
    _
  %s9 = ssub.s32 1, %s7
  %s10 = scalar_select 0, %s9, %s7
  $region1: #{tpu_custom_call.1} parent=0
    #allocation2 [shape = 'u8[262144]{0}', space=vmem, size = 0x40000, scoped, tag = 'input window, operand 2, single buffered']
    #allocation3 [shape = 's32[1]{0}', space=sflag, size = 0x4, scoped, tag = 'scoped memory for tpu_custom_call.1']
    #allocation4 [shape = 's32[1]{0}', space=sflag, size = 0x4, scoped, tag = 'scoped memory for tpu_custom_call.1']
    #allocation5 [shape = 'u8[32768]{0}', space=vmem, size = 0x8000, scoped, tag = 'input window, operand 4, single buffered']
    #allocation6 [shape = 's32[1]{0}', space=sflag, size = 0x4, scoped, tag = 'scoped memory for tpu_custom_call.1']
    #allocation7 [shape = 'u8[1024]{0}', space=vmem, size = 0x400, scoped, tag = 'output window, operand 0, single buffered']
    %11 = vsyncpa [#allocation3], 0
    %12 = vsyncpa [#allocation6], 0
    %13 = vsyncpa [#allocation4], 0
    // Predicated region
    $region2: #{tpu_custom_call.1} parent=1 // pred_check
      _
    $region3: #{tpu_custom_call.1} parent=1 // pred_check_branch
      %15 = sbr.rel (0) target = $region5
    $region4: #{tpu_custom_call.1} parent=1 // pred_region
      _
    $region5: #{tpu_custom_call.1} parent=1 // pred_fallthru
      _
    // Predicated region
    $region6: #{tpu_custom_call.1} parent=1 // pred_check
      _
    $region7: #{tpu_custom_call.1} parent=1 // pred_check_branch
      %17 = sbr.rel (0) target = $region9
    $region8: #{tpu_custom_call.1} parent=1 // pred_region
      _
    $region9: #{tpu_custom_call.1} parent=1 // pred_fallthru
      _
    // Predicated region
    $region10: #{tpu_custom_call.1} parent=1 // pred_check
      _
    $region11: #{tpu_custom_call.1} parent=1 // pred_check_branch
      %19 = sbr.rel (0) target = $region13
    $region12: #{tpu_custom_call.1} parent=1 // pred_region
      %s21 = ssub.s32 8192, 8192
      %22 = vsyncadd [#allocation3], %s21
      %s23 = sshll.u32 [#allocation2], 4
      %s24 = int_to_ptr.vmem [resolvable:$true] %s23
      %29 = dma.hbm_to_vmem [thread:$0]  %s2, 8192, %s24, [#allocation3], 128, 128, 8
    $region13: #{tpu_custom_call.1} parent=1 // pred_fallthru
      _
    // Predicated region
    $region14: #{tpu_custom_call.1} parent=1 // pred_check
      _
    $region15: #{tpu_custom_call.1} parent=1 // pred_check_branch
      %31 = sbr.rel (0) target = $region17
    $region16: #{tpu_custom_call.1} parent=1 // pred_region
      _
    $region17: #{tpu_custom_call.1} parent=1 // pred_fallthru
      _
    // Predicated region
    $region18: #{tpu_custom_call.1} parent=1 // pred_check
      _
    $region19: #{tpu_custom_call.1} parent=1 // pred_check_branch
      %33 = sbr.rel (0) target = $region21
    $region20: #{tpu_custom_call.1} parent=1 // pred_region
      %s35 = ssub.s32 1024, 1024
      %36 = vsyncadd [#allocation6], %s35
      %s37 = sshll.u32 [#allocation5], 4
      %s38 = int_to_ptr.vmem [resolvable:$true] %s37
      %43 = dma.hbm_to_vmem [thread:$0]  %s4, 1024, %s38, [#allocation6], 128, 128, 8
    $region21: #{tpu_custom_call.1} parent=1 // pred_fallthru
      _
    // Predicated region
    $region22: #{tpu_custom_call.1} parent=1 // pred_check
      _
    $region23: #{tpu_custom_call.1} parent=1 // pred_check_branch
      %45 = sbr.rel (0) target = $region25
    $region24: #{tpu_custom_call.1} parent=1 // pred_region
      _
    $region25: #{tpu_custom_call.1} parent=1 // pred_fallthru
      _
    // Predicated region
    $region26: #{tpu_custom_call.1} parent=1 // pred_check
      _
    $region27: #{tpu_custom_call.1} parent=1 // pred_check_branch
      %47 = sbr.rel (0) target = $region29
    $region28: #{tpu_custom_call.1} parent=1 // pred_region
      %48 = dma.done [#allocation3], 8192
    $region29: #{tpu_custom_call.1} parent=1 // pred_fallthru
      _
    // Predicated region
    $region30: #{tpu_custom_call.1} parent=1 // pred_check
      _
    $region31: #{tpu_custom_call.1} parent=1 // pred_check_branch
      %50 = sbr.rel (0) target = $region33
    $region32: #{tpu_custom_call.1} parent=1 // pred_region
      %51 = dma.done [#allocation6], 1024
    $region33: #{tpu_custom_call.1} parent=1 // pred_fallthru
      _
    %v52 = vlaneseq
    %v53 = vand.u32 %v52, 127
    %vm54 = vcmp.ge.s32.totalorder %v53, 0
    %vm55 = vcmp.lt.s32.totalorder %v53, 16
    %vm56 = vmand %vm54, %vm55
    %v57 = vsel %vm56, 1, 0
    %v58 = vcvt.s32.f32 %v57
    %vm59 = vcmp.ge.s32.totalorder %v53, 16
    %vm60 = vcmp.lt.s32.totalorder %v53, 32
    %vm61 = vmand %vm59, %vm60
    %v62 = vsel %vm61, 1, 0
    %v63 = vcvt.s32.f32 %v62
    %v64 = vld [vmem:[%s1] sm:$0xff]
    %v65 = vld [vmem:[%s1 + $0x8] sm:$0xff]
    %v66 = vld [vmem:[%s1 + $0x10] sm:$0xff]
    %v67 = vld [vmem:[%s1 + $0x18] sm:$0xff]
    %v68 = vld [vmem:[%s5] sm:$0xf]
    %v69 = vld [vmem:[%s0] sm:$0xff]
    %v70 = vld [vmem:[%s0 + $0x8] sm:$0xff]
    %vm71 = vcmask 261120
    %v72 = vsel %vm71, %v69, 0.0
    %73 = vadd.xlane.f32.xlu0 %v72
    %v74 = vpop.xlane.xlu0 %73
    %v75 = vsel %vm71, %v70, 0.0
    %76 = vadd.xlane.f32.xlu0 %v75
    %v77 = vpop.xlane.xlu0 %76
    %v78 = vrcp.pop 32.0
    %v79 = vmul.f32 %v74, %v78
    %v80 = vmul.f32 %v77, %v78
    %v81 = vsub.f32 %v69, %v79
    %v82 = vsub.f32 %v70, %v80
    %v83 = vmul.f32 %v81, %v81
    %v84 = vmul.f32 %v82, %v82
    %v85 = vsel %vm71, %v83, 0.0
    %86 = vadd.xlane.f32.xlu0 %v85
    %v87 = vpop.xlane.xlu0 %86
    %v88 = vsel %vm71, %v84, 0.0
    %89 = vadd.xlane.f32.xlu0 %v88
    %v90 = vpop.xlane.xlu0 %89
    %v91 = vmul.f32 %v87, %v78
    %v92 = vmul.f32 %v90, %v78
    %v93 = vadd.f32 %v91, 1e-12
    %v94 = vadd.f32 %v92, 1e-12
    %v95 = vrsqrt.pop %v93
    %v96 = vrsqrt.pop %v94
    %v97 = vmul.f32 %v81, %v95
    %v98 = vmul.f32 %v82, %v96
    %v99 = vlaneseq
    %v100 = vshrl.u32 %v99, 7
    %v101 = vsub.s32 0, %v100
    %v102 = vrot.slane %v68, %v101
    %v103 = vmul.f32 %v97, %v102
    %v104 = vmul.f32 %v98, %v102
    %v105 = vlaneseq
    %v106 = vshrl.u32 %v105, 7
    %v107 = vsub.s32 1, %v106
    %v108 = vrot.slane %v68, %v107
    %v109 = vadd.f32 %v103, %v108
    %v110 = vadd.f32 %v104, %v108
    %v111 = vld [vmem:[#allocation2] sm:$0xff]
    %v112 = vld [vmem:[#allocation2 + $0x8] sm:$0xff]
    %v113 = vld [vmem:[#allocation2 + $0x10] sm:$0xff]
    %v114 = vld [vmem:[#allocation2 + $0x18] sm:$0xff]
    %s115 = scalar_lea.vmem [#allocation2], 64
    %v116 = vld [vmem:[%s115] sm:$0xff]
    %v117 = vld [vmem:[%s115 + $0x8] sm:$0xff]
    %v118 = vld [vmem:[%s115 + $0x10] sm:$0xff]
    %v119 = vld [vmem:[%s115 + $0x18] sm:$0xff]
    %s120 = scalar_lea.vmem [#allocation2], 128
    %v121 = vld [vmem:[%s120] sm:$0xff]
    %v122 = vld [vmem:[%s120 + $0x8] sm:$0xff]
    %v123 = vld [vmem:[%s120 + $0x10] sm:$0xff]
    %v124 = vld [vmem:[%s120 + $0x18] sm:$0xff]
    %s125 = scalar_lea.vmem [#allocation2], 192
    %v126 = vld [vmem:[%s125] sm:$0xff]
    %v127 = vld [vmem:[%s125 + $0x8] sm:$0xff]
    %v128 = vld [vmem:[%s125 + $0x10] sm:$0xff]
    %v129 = vld [vmem:[%s125 + $0x18] sm:$0xff]
    %v130 = vld [vmem:[%s125 + $0x20] sm:$0xff]
    %v131 = vld [vmem:[%s125 + $0x28] sm:$0xff]
    %v132 = vld [vmem:[%s125 + $0x30] sm:$0xff]
    %v133 = vld [vmem:[%s125 + $0x38] sm:$0xff]
    %v134 = vld [vmem:[%s3] sm:$0xff]
    %v135 = vlaneseq
    %v136 = vshrl.u32 %v135, 7
    %v137 = vsub.s32 0, %v136
    %v138 = vrot.slane %v134, %v137
    %v140 = vsel %vm71, %v109, 0
    %v143 = vsel %vm71, %v110, 0
    %145 = vmatprep.subr.mxu0 0.0
    %146 = vmatpush1.msra.mxu0 %v111
    %147 = vmatprep.subr.mxu0 0.0
    %148 = vmatpush1.msra.mxu0 %v112
    %149 = vmatprep.subr.mxu0 0.0
    %150 = vmatpush1.msra.mxu0 %v113
    %151 = vmatprep.subr.mxu0 0.0
    %152 = vmatpush1.msra.mxu0 %v114
    %153 = vmatprep.subr.mxu0 0.0
    %154 = vmatpush1.msra.mxu0 0.0
    %155 = vmatprep.subr.mxu0 0.0
    %156 = vmatpush1.msra.mxu0 0.0
    %157 = vmatprep.subr.mxu0 0.0
    %158 = vmatpush1.msra.mxu0 0.0
    %159 = vmatprep.subr.mxu0 0.0
    %160 = vmatpush1.msra.mxu0 0.0
    %161 = vmatprep.subr.mxu0 0.0
    %162 = vmatpush1.msra.mxu0 0.0
    %163 = vmatprep.subr.mxu0 0.0
    %164 = vmatpush1.msra.mxu0 0.0
    %165 = vmatprep.subr.mxu0 0.0
    %166 = vmatpush1.msra.mxu0 0.0
    %167 = vmatprep.subr.mxu0 0.0
    %168 = vmatpush1.msra.mxu0 0.0
    %169 = vmatprep.subr.mxu0 0.0
    %170 = vmatpush1.msra.mxu0 0.0
    %171 = vmatprep.subr.mxu0 0.0
    %172 = vmatpush1.msra.mxu0 0.0
    %173 = vmatprep.subr.mxu0 0.0
    %174 = vmatpush1.msra.mxu0 0.0
    %175 = vmatprep.subr.mxu0 0.0
    %176 = vmatpush1.msra.mxu0 0.0
    %177 = vmatprep.subr.mxu0 0.0
    %178 = vmatpush1.msra.mxu0 0.0
    %179 = vmatprep.subr.mxu0 0.0
    %180 = vmatpush1.msra.mxu0 0.0
    %181 = vmatprep.subr.mxu0 0.0
    %182 = vmatpush1.msra.mxu0 0.0
    %183 = vmatprep.subr.mxu0 0.0
    %184 = vmatpush1.msra.mxu0 0.0
    %185 = vmatprep.subr.mxu0 0.0
    %186 = vmatpush1.msra.mxu0 0.0
    %187 = vmatprep.subr.mxu0 0.0
    %188 = vmatpush1.msra.mxu0 0.0
    %189 = vmatprep.subr.mxu0 0.0
    %190 = vmatpush1.msra.mxu0 0.0
    %191 = vmatprep.subr.mxu0 0.0
    %192 = vmatpush1.msra.mxu0 0.0
    %193 = vmatprep.subr.mxu0 0.0
    %194 = vmatpush1.msra.mxu0 0.0
    %195 = vmatprep.subr.mxu0 0.0
    %196 = vmatpush1.msra.mxu0 0.0
    %197 = vmatprep.subr.mxu0 0.0
    %198 = vmatpush1.msra.mxu0 0.0
    %199 = vmatprep.subr.mxu0 0.0
    %200 = vmatpush1.msra.mxu0 0.0
    %201 = vmatprep.subr.mxu0 0.0
    %202 = vmatpush1.msra.mxu0 0.0
    %203 = vmatprep.subr.mxu0 0.0
    %204 = vmatpush1.msra.mxu0 0.0
    %205 = vmatprep.subr.mxu0 0.0
    %206 = vmatpush1.msra.mxu0 0.0
    %207 = vmatprep.subr.mxu0 0.0
    %208 = vmatpush1.msra.mxu0 0.0
    %209 = vmatprep.mubr.f32.mxu0 0.0
    %210 = vmatmul.mubr.f32.gmra.mrb[0].mxu0 %v140
    %v211 = vpop.f32.mrb[0].mxu0
    %v212 = vadd.f32 %v138, %v211
    %v213 = vpop.f32.mrb[0].mxu0
    %214 = vmatprep.mubr.f32.mxu0 0.0
    %215 = vmatmul.mubr.f32.gmra.mrb[0].mxu0 %v143
    %v216 = vpop.f32.mrb[0].mxu0
    %v217 = vadd.f32 %v138, %v216
    %v218 = vpop.f32.mrb[0].mxu0
    %219 = vdwg.mxu0
    %v220 = vmul.f32 %v212, %v58
    %v221 = vmul.f32 %v212, %v63
    %v222 = vmul.f32 %v217, %v58
    %v223 = vmul.f32 %v217, %v63
    %226 = vrot.lane.b32.xlu0 %v212, 96
    %v227 = vpop.permute.xlu0 %226
    %228 = vrot.lane.b32.xlu0 %v217, 96
    %v229 = vpop.permute.xlu0 %228
    %v231 = vsel %vm71, %v220, 0
    %v234 = vsel %vm71, %v221, 0
    %v237 = vsel %vm71, %v222, 0
    %v240 = vsel %vm71, %v223, 0
    %v242 = vsel %vm71, %v227, 0
    %v244 = vsel %vm71, %v229, 0
    %246 = vmatprep.subr.mxu0 0.0
    %247 = vmatpush1.xpose.msra.mxu0 %v242
    %248 = vmatprep.subr.mxu0 0.0
    %249 = vmatpush1.xpose.msra.mxu0 %v244
    %250 = vmatprep.subr.mxu0 0.0
    %251 = vmatpush1.xpose.msra.mxu0 0.0
    %252 = vmatprep.subr.mxu0 0.0
    %253 = vmatpush1.xpose.msra.mxu0 0.0
    %254 = vmatprep.subr.mxu0 0.0
    %255 = vmatpush1.xpose.msra.mxu0 0.0
    %256 = vmatprep.subr.mxu0 0.0
    %257 = vmatpush1.xpose.msra.mxu0 0.0
    %258 = vmatprep.subr.mxu0 0.0
    %259 = vmatpush1.xpose.msra.mxu0 0.0
    %260 = vmatprep.subr.mxu0 0.0
    %261 = vmatpush1.xpose.msra.mxu0 0.0
    %262 = vmatprep.subr.mxu0 0.0
    %263 = vmatpush1.xpose.msra.mxu0 0.0
    %264 = vmatprep.subr.mxu0 0.0
    %265 = vmatpush1.xpose.msra.mxu0 0.0
    %266 = vmatprep.subr.mxu0 0.0
    %267 = vmatpush1.xpose.msra.mxu0 0.0
    %268 = vmatprep.subr.mxu0 0.0
    %269 = vmatpush1.xpose.msra.mxu0 0.0
    %270 = vmatprep.subr.mxu0 0.0
    %271 = vmatpush1.xpose.msra.mxu0 0.0
    %272 = vmatprep.subr.mxu0 0.0
    %273 = vmatpush1.xpose.msra.mxu0 0.0
    %274 = vmatprep.subr.mxu0 0.0
    %275 = vmatpush1.xpose.msra.mxu0 0.0
    %276 = vmatprep.subr.mxu0 0.0
    %277 = vmatpush1.xpose.msra.mxu0 0.0
    %278 = vmatprep.subr.mxu0 0.0
    %279 = vmatpush1.xpose.msra.mxu0 0.0
    %280 = vmatprep.subr.mxu0 0.0
    %281 = vmatpush1.xpose.msra.mxu0 0.0
    %282 = vmatprep.subr.mxu0 0.0
    %283 = vmatpush1.xpose.msra.mxu0 0.0
    %284 = vmatprep.subr.mxu0 0.0
    %285 = vmatpush1.xpose.msra.mxu0 0.0
    %286 = vmatprep.subr.mxu0 0.0
    %287 = vmatpush1.xpose.msra.mxu0 0.0
    %288 = vmatprep.subr.mxu0 0.0
    %289 = vmatpush1.xpose.msra.mxu0 0.0
    %290 = vmatprep.subr.mxu0 0.0
    %291 = vmatpush1.xpose.msra.mxu0 0.0
    %292 = vmatprep.subr.mxu0 0.0
    %293 = vmatpush1.xpose.msra.mxu0 0.0
    %294 = vmatprep.subr.mxu0 0.0
    %295 = vmatpush1.xpose.msra.mxu0 0.0
    %296 = vmatprep.subr.mxu0 0.0
    %297 = vmatpush1.xpose.msra.mxu0 0.0
    %298 = vmatprep.subr.mxu0 0.0
    %299 = vmatpush1.xpose.msra.mxu0 0.0
    %300 = vmatprep.subr.mxu0 0.0
    %301 = vmatpush1.xpose.msra.mxu0 0.0
    %302 = vmatprep.subr.mxu0 0.0
    %303 = vmatpush1.xpose.msra.mxu0 0.0
    %304 = vmatprep.subr.mxu0 0.0
    %305 = vmatpush1.xpose.msra.mxu0 0.0
    %306 = vmatprep.subr.mxu0 0.0
    %307 = vmatpush1.xpose.msra.mxu0 0.0
    %308 = vmatprep.subr.mxu0 0.0
    %309 = vmatpush1.xpose.msra.mxu0 0.0
    %310 = vmatprep.mubr.f32.mxu0 0.0
    %311 = vmatmul.mubr.f32.gmra.mrb[0].mxu0 %v231
    %v312 = vpop.f32.mrb[0].mxu0
    %v313 = vadd.f32 0.0, %v312
    %v314 = vpop.f32.mrb[0].mxu0
    %315 = vmatprep.mubr.f32.mxu0 0.0
    %316 = vmatmul.mubr.f32.gmra.mrb[0].mxu0 %v234
    %v317 = vpop.f32.mrb[0].mxu0
    %v318 = vadd.f32 0.0, %v317
    %v319 = vpop.f32.mrb[0].mxu0
    %320 = vmatprep.mubr.f32.mxu0 0.0
    %321 = vmatmul.mubr.f32.gmra.mrb[0].mxu0 %v237
    %v322 = vpop.f32.mrb[0].mxu0
    %v323 = vadd.f32 0.0, %v322
    %v324 = vpop.f32.mrb[0].mxu0
    %325 = vmatprep.mubr.f32.mxu0 0.0
    %326 = vmatmul.mubr.f32.gmra.mrb[0].mxu0 %v240
    %v327 = vpop.f32.mrb[0].mxu0
    %v328 = vadd.f32 0.0, %v327
    %v329 = vpop.f32.mrb[0].mxu0
    %330 = vdwg.mxu0
    %v331 = vmul.f32 %v313, 0.25
    %v332 = vmul.f32 %v318, 0.25
    %v333 = vmul.f32 %v323, 0.25
    %v334 = vmul.f32 %v328, 0.25
    %v335 = vadd.f32 %v331, %v64
    %v336 = vadd.f32 %v332, %v65
    %v337 = vadd.f32 %v333, %v66
    %v338 = vadd.f32 %v334, %v67
    %vm339 = vcmask 130048
    %v340 = vsel %vm339, %v335, -inf
    %341 = vmax.xlane.f32.xlu0 %v340
    %v342 = vpop.xlane.xlu0 %341
    %v343 = vsel %vm339, %v336, -inf
    %344 = vmax.xlane.f32.xlu0 %v343
    %v345 = vpop.xlane.xlu0 %344
    %v346 = vsel %vm339, %v337, -inf
    %347 = vmax.xlane.f32.xlu0 %v346
    %v348 = vpop.xlane.xlu0 %347
    %v349 = vsel %vm339, %v338, -inf
    %350 = vmax.xlane.f32.xlu0 %v349
    %v351 = vpop.xlane.xlu0 %350
    %v352 = vsub.f32 %v335, %v342
    %v353 = vsub.f32 %v336, %v345
    %v354 = vsub.f32 %v337, %v348
    %v355 = vsub.f32 %v338, %v351
    %v356 = vmul.f32 %v352, 1.442695
    %v357 = vpow.pop %v356
    %v358 = vmul.f32 %v353, 1.442695
    %v359 = vpow.pop %v358
    %v360 = vmul.f32 %v354, 1.442695
    %v361 = vpow.pop %v360
    %v362 = vmul.f32 %v355, 1.442695
    %v363 = vpow.pop %v362
    %v364 = vsel %vm339, %v357, 0.0
    %365 = vadd.xlane.f32.xlu0 %v364
    %v366 = vpop.xlane.xlu0 %365
    %v367 = vsel %vm339, %v359, 0.0
    %368 = vadd.xlane.f32.xlu0 %v367
    %v369 = vpop.xlane.xlu0 %368
    %v370 = vsel %vm339, %v361, 0.0
    %371 = vadd.xlane.f32.xlu0 %v370
    %v372 = vpop.xlane.xlu0 %371
    %v373 = vsel %vm339, %v363, 0.0
    %374 = vadd.xlane.f32.xlu0 %v373
    %v375 = vpop.xlane.xlu0 %374
    %v376 = vrcp.pop %v366
    %v377 = vrcp.pop %v369
    %v378 = vrcp.pop %v372
    %v379 = vrcp.pop %v375
    %v380 = vmul.f32 %v357, %v376
    %v381 = vmul.f32 %v359, %v377
    %v382 = vmul.f32 %v361, %v378
    %v383 = vmul.f32 %v363, %v379
    %384 = vrot.lane.b32.xlu0 %v212, 64
    %v385 = vpop.permute.xlu0 %384
    %386 = vrot.lane.b32.xlu0 %v217, 64
    %v387 = vpop.permute.xlu0 %386
    %v391 = vsel %vm339, %v380, 0
    %v394 = vsel %vm339, %v381, 0
    %v397 = vsel %vm339, %v382, 0
    %v400 = vsel %vm339, %v383, 0
    %402 = vmatprep.subr.mxu0 0.0
    %403 = vmatpush1.msra.mxu0 %v385
    %404 = vmatprep.subr.mxu0 0.0
    %405 = vmatpush1.msra.mxu0 %v387
    %406 = vmatprep.subr.mxu0 0.0
    %407 = vmatpush1.msra.mxu0 0.0
    %408 = vmatprep.subr.mxu0 0.0
    %409 = vmatpush1.msra.mxu0 0.0
    %410 = vmatprep.subr.mxu0 0.0
    %411 = vmatpush1.msra.mxu0 0.0
    %412 = vmatprep.subr.mxu0 0.0
    %413 = vmatpush1.msra.mxu0 0.0
    %414 = vmatprep.subr.mxu0 0.0
    %415 = vmatpush1.msra.mxu0 0.0
    %416 = vmatprep.subr.mxu0 0.0
    %417 = vmatpush1.msra.mxu0 0.0
    %418 = vmatprep.subr.mxu0 0.0
    %419 = vmatpush1.msra.mxu0 0.0
    %420 = vmatprep.subr.mxu0 0.0
    %421 = vmatpush1.msra.mxu0 0.0
    %422 = vmatprep.subr.mxu0 0.0
    %423 = vmatpush1.msra.mxu0 0.0
    %424 = vmatprep.subr.mxu0 0.0
    %425 = vmatpush1.msra.mxu0 0.0
    %426 = vmatprep.subr.mxu0 0.0
    %427 = vmatpush1.msra.mxu0 0.0
    %428 = vmatprep.subr.mxu0 0.0
    %429 = vmatpush1.msra.mxu0 0.0
    %430 = vmatprep.subr.mxu0 0.0
    %431 = vmatpush1.msra.mxu0 0.0
    %432 = vmatprep.subr.mxu0 0.0
    %433 = vmatpush1.msra.mxu0 0.0
    %434 = vmatprep.subr.mxu0 0.0
    %435 = vmatpush1.msra.mxu0 0.0
    %436 = vmatprep.subr.mxu0 0.0
    %437 = vmatpush1.msra.mxu0 0.0
    %438 = vmatprep.subr.mxu0 0.0
    %439 = vmatpush1.msra.mxu0 0.0
    %440 = vmatprep.subr.mxu0 0.0
    %441 = vmatpush1.msra.mxu0 0.0
    %442 = vmatprep.subr.mxu0 0.0
    %443 = vmatpush1.msra.mxu0 0.0
    %444 = vmatprep.subr.mxu0 0.0
    %445 = vmatpush1.msra.mxu0 0.0
    %446 = vmatprep.subr.mxu0 0.0
    %447 = vmatpush1.msra.mxu0 0.0
    %448 = vmatprep.subr.mxu0 0.0
    %449 = vmatpush1.msra.mxu0 0.0
    %450 = vmatprep.subr.mxu0 0.0
    %451 = vmatpush1.msra.mxu0 0.0
    %452 = vmatprep.subr.mxu0 0.0
    %453 = vmatpush1.msra.mxu0 0.0
    %454 = vmatprep.subr.mxu0 0.0
    %455 = vmatpush1.msra.mxu0 0.0
    %456 = vmatprep.subr.mxu0 0.0
    %457 = vmatpush1.msra.mxu0 0.0
    %458 = vmatprep.subr.mxu0 0.0
    %459 = vmatpush1.msra.mxu0 0.0
    %460 = vmatprep.subr.mxu0 0.0
    %461 = vmatpush1.msra.mxu0 0.0
    %462 = vmatprep.subr.mxu0 0.0
    %463 = vmatpush1.msra.mxu0 0.0
    %464 = vmatprep.subr.mxu0 0.0
    %465 = vmatpush1.msra.mxu0 0.0
    %466 = vmatprep.mubr.f32.mxu0 0.0
    %467 = vmatmul.mubr.f32.gmra.mrb[0].mxu0 %v391
    %v468 = vpop.f32.mrb[0].mxu0
    %v469 = vadd.f32 0.0, %v468
    %v470 = vpop.f32.mrb[0].mxu0
    %471 = vmatprep.mubr.f32.mxu0 0.0
    %472 = vmatmul.mubr.f32.gmra.mrb[0].mxu0 %v394
    %v473 = vpop.f32.mrb[0].mxu0
    %v474 = vadd.f32 0.0, %v473
    %v475 = vpop.f32.mrb[0].mxu0
    %476 = vmatprep.mubr.f32.mxu0 0.0
    %477 = vmatmul.mubr.f32.gmra.mrb[0].mxu0 %v397
    %v478 = vpop.f32.mrb[0].mxu0
    %v479 = vadd.f32 0.0, %v478
    %v480 = vpop.f32.mrb[0].mxu0
    %481 = vmatprep.mubr.f32.mxu0 0.0
    %482 = vmatmul.mubr.f32.gmra.mrb[0].mxu0 %v400
    %v483 = vpop.f32.mrb[0].mxu0
    %v484 = vadd.f32 0.0, %v483
    %v485 = vpop.f32.mrb[0].mxu0
    %486 = vdwg.mxu0
    %v487 = vmul.f32 %v469, %v58
    %v488 = vmul.f32 %v474, %v63
    %v489 = vadd.f32 %v487, %v488
    %v490 = vmul.f32 %v479, %v58
    %v491 = vmul.f32 %v484, %v63
    %v492 = vadd.f32 %v490, %v491
    %v493 = vlaneseq
    %v494 = vshrl.u32 %v493, 7
    %v495 = vsub.s32 1, %v494
    %v496 = vrot.slane %v134, %v495
    %v498 = vsel %vm71, %v489, 0
    %v501 = vsel %vm71, %v492, 0
    %503 = vmatprep.subr.mxu0 0.0
    %504 = vmatpush1.msra.mxu0 %v116
    %505 = vmatprep.subr.mxu0 0.0
    %506 = vmatpush1.msra.mxu0 %v117
    %507 = vmatprep.subr.mxu0 0.0
    %508 = vmatpush1.msra.mxu0 %v118
    %509 = vmatprep.subr.mxu0 0.0
    %510 = vmatpush1.msra.mxu0 %v119
    %511 = vmatprep.subr.mxu0 0.0
    %512 = vmatpush1.msra.mxu0 0.0
    %513 = vmatprep.subr.mxu0 0.0
    %514 = vmatpush1.msra.mxu0 0.0
    %515 = vmatprep.subr.mxu0 0.0
    %516 = vmatpush1.msra.mxu0 0.0
    %517 = vmatprep.subr.mxu0 0.0
    %518 = vmatpush1.msra.mxu0 0.0
    %519 = vmatprep.subr.mxu0 0.0
    %520 = vmatpush1.msra.mxu0 0.0
    %521 = vmatprep.subr.mxu0 0.0
    %522 = vmatpush1.msra.mxu0 0.0
    %523 = vmatprep.subr.mxu0 0.0
    %524 = vmatpush1.msra.mxu0 0.0
    %525 = vmatprep.subr.mxu0 0.0
    %526 = vmatpush1.msra.mxu0 0.0
    %527 = vmatprep.subr.mxu0 0.0
    %528 = vmatpush1.msra.mxu0 0.0
    %529 = vmatprep.subr.mxu0 0.0
    %530 = vmatpush1.msra.mxu0 0.0
    %531 = vmatprep.subr.mxu0 0.0
    %532 = vmatpush1.msra.mxu0 0.0
    %533 = vmatprep.subr.mxu0 0.0
    %534 = vmatpush1.msra.mxu0 0.0
    %535 = vmatprep.subr.mxu0 0.0
    %536 = vmatpush1.msra.mxu0 0.0
    %537 = vmatprep.subr.mxu0 0.0
    %538 = vmatpush1.msra.mxu0 0.0
    %539 = vmatprep.subr.mxu0 0.0
    %540 = vmatpush1.msra.mxu0 0.0
    %541 = vmatprep.subr.mxu0 0.0
    %542 = vmatpush1.msra.mxu0 0.0
    %543 = vmatprep.subr.mxu0 0.0
    %544 = vmatpush1.msra.mxu0 0.0
    %545 = vmatprep.subr.mxu0 0.0
    %546 = vmatpush1.msra.mxu0 0.0
    %547 = vmatprep.subr.mxu0 0.0
    %548 = vmatpush1.msra.mxu0 0.0
    %549 = vmatprep.subr.mxu0 0.0
    %550 = vmatpush1.msra.mxu0 0.0
    %551 = vmatprep.subr.mxu0 0.0
    %552 = vmatpush1.msra.mxu0 0.0
    %553 = vmatprep.subr.mxu0 0.0
    %554 = vmatpush1.msra.mxu0 0.0
    %555 = vmatprep.subr.mxu0 0.0
    %556 = vmatpush1.msra.mxu0 0.0
    %557 = vmatprep.subr.mxu0 0.0
    %558 = vmatpush1.msra.mxu0 0.0
    %559 = vmatprep.subr.mxu0 0.0
    %560 = vmatpush1.msra.mxu0 0.0
    %561 = vmatprep.subr.mxu0 0.0
    %562 = vmatpush1.msra.mxu0 0.0
    %563 = vmatprep.subr.mxu0 0.0
    %564 = vmatpush1.msra.mxu0 0.0
    %565 = vmatprep.subr.mxu0 0.0
    %566 = vmatpush1.msra.mxu0 0.0
    %567 = vmatprep.mubr.f32.mxu0 0.0
    %568 = vmatmul.mubr.f32.gmra.mrb[0].mxu0 %v498
    %v569 = vpop.f32.mrb[0].mxu0
    %v570 = vadd.f32 %v496, %v569
    %v571 = vpop.f32.mrb[0].mxu0
    %572 = vmatprep.mubr.f32.mxu0 0.0
    %573 = vmatmul.mubr.f32.gmra.mrb[0].mxu0 %v501
    %v574 = vpop.f32.mrb[0].mxu0
    %v575 = vadd.f32 %v496, %v574
    %v576 = vpop.f32.mrb[0].mxu0
    %577 = vdwg.mxu0
    %v578 = vadd.f32 %v570, %v109
    %v579 = vadd.f32 %v575, %v110
    %v580 = vsel %vm71, %v578, 0.0
    %581 = vadd.xlane.f32.xlu0 %v580
    %v582 = vpop.xlane.xlu0 %581
    %v583 = vsel %vm71, %v579, 0.0
    %584 = vadd.xlane.f32.xlu0 %v583
    %v585 = vpop.xlane.xlu0 %584
    %v586 = vmul.f32 %v582, %v78
    %v587 = vmul.f32 %v585, %v78
    %v588 = vsub.f32 %v578, %v586
    %v589 = vsub.f32 %v579, %v587
    %v590 = vmul.f32 %v588, %v588
    %v591 = vmul.f32 %v589, %v589
    %v592 = vsel %vm71, %v590, 0.0
    %593 = vadd.xlane.f32.xlu0 %v592
    %v594 = vpop.xlane.xlu0 %593
    %v595 = vsel %vm71, %v591, 0.0
    %596 = vadd.xlane.f32.xlu0 %v595
    %v597 = vpop.xlane.xlu0 %596
    %v598 = vmul.f32 %v594, %v78
    %v599 = vmul.f32 %v597, %v78
    %v600 = vadd.f32 %v598, 1e-12
    %v601 = vadd.f32 %v599, 1e-12
    %v602 = vrsqrt.pop %v600
    %v603 = vrsqrt.pop %v601
    %v604 = vmul.f32 %v588, %v602
    %v605 = vmul.f32 %v589, %v603
    %v606 = vlaneseq
    %v607 = vshrl.u32 %v606, 7
    %v608 = vsub.s32 2, %v607
    %v609 = vrot.slane %v134, %v608
    %v610 = vmul.f32 %v604, %v609
    %v611 = vmul.f32 %v605, %v609
    %v612 = vlaneseq
    %v613 = vshrl.u32 %v612, 7
    %v614 = vsub.s32 3, %v613
    %v615 = vrot.slane %v134, %v614
    %v616 = vadd.f32 %v610, %v615
    %v617 = vadd.f32 %v611, %v615
    %v618 = vlaneseq
    %v619 = vshrl.u32 %v618, 7
    %v620 = vsub.s32 4, %v619
    %v621 = vrot.slane %v134, %v620
    %v623 = vsel %vm71, %v616, 0
    %v626 = vsel %vm71, %v617, 0
    %628 = vmatprep.subr.mxu0 0.0
    %629 = vmatpush1.msra.mxu0 %v121
    %630 = vmatprep.subr.mxu0 0.0
    %631 = vmatpush1.msra.mxu0 %v122
    %632 = vmatprep.subr.mxu0 0.0
    %633 = vmatpush1.msra.mxu0 %v123
    %634 = vmatprep.subr.mxu0 0.0
    %635 = vmatpush1.msra.mxu0 %v124
    %636 = vmatprep.subr.mxu0 0.0
    %637 = vmatpush1.msra.mxu0 0.0
    %638 = vmatprep.subr.mxu0 0.0
    %639 = vmatpush1.msra.mxu0 0.0
    %640 = vmatprep.subr.mxu0 0.0
    %641 = vmatpush1.msra.mxu0 0.0
    %642 = vmatprep.subr.mxu0 0.0
    %643 = vmatpush1.msra.mxu0 0.0
    %644 = vmatprep.subr.mxu0 0.0
    %645 = vmatpush1.msra.mxu0 0.0
    %646 = vmatprep.subr.mxu0 0.0
    %647 = vmatpush1.msra.mxu0 0.0
    %648 = vmatprep.subr.mxu0 0.0
    %649 = vmatpush1.msra.mxu0 0.0
    %650 = vmatprep.subr.mxu0 0.0
    %651 = vmatpush1.msra.mxu0 0.0
    %652 = vmatprep.subr.mxu0 0.0
    %653 = vmatpush1.msra.mxu0 0.0
    %654 = vmatprep.subr.mxu0 0.0
    %655 = vmatpush1.msra.mxu0 0.0
    %656 = vmatprep.subr.mxu0 0.0
    %657 = vmatpush1.msra.mxu0 0.0
    %658 = vmatprep.subr.mxu0 0.0
    %659 = vmatpush1.msra.mxu0 0.0
    %660 = vmatprep.subr.mxu0 0.0
    %661 = vmatpush1.msra.mxu0 0.0
    %662 = vmatprep.subr.mxu0 0.0
    %663 = vmatpush1.msra.mxu0 0.0
    %664 = vmatprep.subr.mxu0 0.0
    %665 = vmatpush1.msra.mxu0 0.0
    %666 = vmatprep.subr.mxu0 0.0
    %667 = vmatpush1.msra.mxu0 0.0
    %668 = vmatprep.subr.mxu0 0.0
    %669 = vmatpush1.msra.mxu0 0.0
    %670 = vmatprep.subr.mxu0 0.0
    %671 = vmatpush1.msra.mxu0 0.0
    %672 = vmatprep.subr.mxu0 0.0
    %673 = vmatpush1.msra.mxu0 0.0
    %674 = vmatprep.subr.mxu0 0.0
    %675 = vmatpush1.msra.mxu0 0.0
    %676 = vmatprep.subr.mxu0 0.0
    %677 = vmatpush1.msra.mxu0 0.0
    %678 = vmatprep.subr.mxu0 0.0
    %679 = vmatpush1.msra.mxu0 0.0
    %680 = vmatprep.subr.mxu0 0.0
    %681 = vmatpush1.msra.mxu0 0.0
    %682 = vmatprep.subr.mxu0 0.0
    %683 = vmatpush1.msra.mxu0 0.0
    %684 = vmatprep.subr.mxu0 0.0
    %685 = vmatpush1.msra.mxu0 0.0
    %686 = vmatprep.subr.mxu0 0.0
    %687 = vmatpush1.msra.mxu0 0.0
    %688 = vmatprep.subr.mxu0 0.0
    %689 = vmatpush1.msra.mxu0 0.0
    %690 = vmatprep.subr.mxu0 0.0
    %691 = vmatpush1.msra.mxu0 0.0
    %692 = vmatprep.mubr.f32.mxu0 0.0
    %693 = vmatmul.mubr.f32.gmra.mrb[0].mxu0 %v623
    %v694 = vpop.f32.mrb[0].mxu0
    %v695 = vadd.f32 %v621, %v694
    %v696 = vpop.f32.mrb[0].mxu0
    %697 = vmatprep.mubr.f32.mxu0 0.0
    %698 = vmatmul.mubr.f32.gmra.mrb[0].mxu0 %v626
    %v699 = vpop.f32.mrb[0].mxu0
    %v700 = vadd.f32 %v621, %v699
    %v701 = vpop.f32.mrb[0].mxu0
    %702 = vdwg.mxu0
    %v703 = vmul.f32 %v695, 0.5
    %v704 = vmul.f32 %v700, 0.5
    %v705 = vmul.f32 %v695, 0.044715
    %v706 = vmul.f32 %v700, 0.044715
    %v707 = vmul.f32 %v705, %v695
    %v708 = vmul.f32 %v706, %v700
    %v709 = vmul.f32 %v707, %v695
    %v710 = vmul.f32 %v708, %v700
    %v711 = vadd.f32 %v695, %v709
    %v712 = vadd.f32 %v700, %v710
    %v713 = vmul.f32 %v711, 0.7978846
    %v714 = vmul.f32 %v712, 0.7978846
    %v715 = vtanh.pop %v713
    %v716 = vtanh.pop %v714
    %v717 = vadd.f32 %v715, 1.0
    %v718 = vadd.f32 %v716, 1.0
    %v719 = vmul.f32 %v703, %v717
    %v720 = vmul.f32 %v704, %v718
    %v721 = vlaneseq
    %v722 = vshrl.u32 %v721, 7
    %v723 = vsub.s32 5, %v722
    %v724 = vrot.slane %v134, %v723
    %vm725 = vcmask 523264
    %v727 = vsel %vm725, %v719, 0
    %v730 = vsel %vm725, %v720, 0
    %732 = vmatprep.subr.mxu0 0.0
    %733 = vmatpush1.msra.mxu0 %v126
    %734 = vmatprep.subr.mxu0 0.0
    %735 = vmatpush1.msra.mxu0 %v127
    %736 = vmatprep.subr.mxu0 0.0
    %737 = vmatpush1.msra.mxu0 %v128
    %738 = vmatprep.subr.mxu0 0.0
    %739 = vmatpush1.msra.mxu0 %v129
    %740 = vmatprep.subr.mxu0 0.0
    %741 = vmatpush1.msra.mxu0 %v130
    %742 = vmatprep.subr.mxu0 0.0
    %743 = vmatpush1.msra.mxu0 %v131
    %744 = vmatprep.subr.mxu0 0.0
    %745 = vmatpush1.msra.mxu0 %v132
    %746 = vmatprep.subr.mxu0 0.0
    %747 = vmatpush1.msra.mxu0 %v133
    %748 = vmatprep.subr.mxu0 0.0
    %749 = vmatpush1.msra.mxu0 0.0
    %750 = vmatprep.subr.mxu0 0.0
    %751 = vmatpush1.msra.mxu0 0.0
    %752 = vmatprep.subr.mxu0 0.0
    %753 = vmatpush1.msra.mxu0 0.0
    %754 = vmatprep.subr.mxu0 0.0
    %755 = vmatpush1.msra.mxu0 0.0
    %756 = vmatprep.subr.mxu0 0.0
    %757 = vmatpush1.msra.mxu0 0.0
    %758 = vmatprep.subr.mxu0 0.0
    %759 = vmatpush1.msra.mxu0 0.0
    %760 = vmatprep.subr.mxu0 0.0
    %761 = vmatpush1.msra.mxu0 0.0
    %762 = vmatprep.subr.mxu0 0.0
    %763 = vmatpush1.msra.mxu0 0.0
    %764 = vmatprep.subr.mxu0 0.0
    %765 = vmatpush1.msra.mxu0 0.0
    %766 = vmatprep.subr.mxu0 0.0
    %767 = vmatpush1.msra.mxu0 0.0
    %768 = vmatprep.subr.mxu0 0.0
    %769 = vmatpush1.msra.mxu0 0.0
    %770 = vmatprep.subr.mxu0 0.0
    %771 = vmatpush1.msra.mxu0 0.0
    %772 = vmatprep.subr.mxu0 0.0
    %773 = vmatpush1.msra.mxu0 0.0
    %774 = vmatprep.subr.mxu0 0.0
    %775 = vmatpush1.msra.mxu0 0.0
    %776 = vmatprep.subr.mxu0 0.0
    %777 = vmatpush1.msra.mxu0 0.0
    %778 = vmatprep.subr.mxu0 0.0
    %779 = vmatpush1.msra.mxu0 0.0
    %780 = vmatprep.subr.mxu0 0.0
    %781 = vmatpush1.msra.mxu0 0.0
    %782 = vmatprep.subr.mxu0 0.0
    %783 = vmatpush1.msra.mxu0 0.0
    %784 = vmatprep.subr.mxu0 0.0
    %785 = vmatpush1.msra.mxu0 0.0
    %786 = vmatprep.subr.mxu0 0.0
    %787 = vmatpush1.msra.mxu0 0.0
    %788 = vmatprep.subr.mxu0 0.0
    %789 = vmatpush1.msra.mxu0 0.0
    %790 = vmatprep.subr.mxu0 0.0
    %791 = vmatpush1.msra.mxu0 0.0
    %792 = vmatprep.subr.mxu0 0.0
    %793 = vmatpush1.msra.mxu0 0.0
    %794 = vmatprep.subr.mxu0 0.0
    %795 = vmatpush1.msra.mxu0 0.0
    %796 = vmatprep.mubr.f32.mxu0 0.0
    %797 = vmatmul.mubr.f32.gmra.mrb[0].mxu0 %v727
    %v798 = vpop.f32.mrb[0].mxu0
    %v799 = vadd.f32 %v724, %v798
    %v800 = vpop.f32.mrb[0].mxu0
    %801 = vmatprep.mubr.f32.mxu0 0.0
    %802 = vmatmul.mubr.f32.gmra.mrb[0].mxu0 %v730
    %v803 = vpop.f32.mrb[0].mxu0
    %v804 = vadd.f32 %v724, %v803
    %v805 = vpop.f32.mrb[0].mxu0
    %806 = vdwg.mxu0
    %v807 = vadd.f32 %v799, %v616
    %v808 = vadd.f32 %v804, %v617
    %v809 = vsel %vm71, %v807, 0.0
    %810 = vadd.xlane.f32.xlu0 %v809
    %v811 = vpop.xlane.xlu0 %810
    %v812 = vsel %vm71, %v808, 0.0
    %813 = vadd.xlane.f32.xlu0 %v812
    %v814 = vpop.xlane.xlu0 %813
    %v815 = vmul.f32 %v811, %v78
    %v816 = vmul.f32 %v814, %v78
    %v817 = vsub.f32 %v807, %v815
    %v818 = vsub.f32 %v808, %v816
    %v819 = vmul.f32 %v817, %v817
    %v820 = vmul.f32 %v818, %v818
    %v821 = vsel %vm71, %v819, 0.0
    %822 = vadd.xlane.f32.xlu0 %v821
    %v823 = vpop.xlane.xlu0 %822
    %v824 = vsel %vm71, %v820, 0.0
    %825 = vadd.xlane.f32.xlu0 %v824
    %v826 = vpop.xlane.xlu0 %825
    %v827 = vmul.f32 %v823, %v78
    %v828 = vmul.f32 %v826, %v78
    %v829 = vadd.f32 %v827, 1e-12
    %v830 = vadd.f32 %v828, 1e-12
    %v831 = vrsqrt.pop %v829
    %v832 = vrsqrt.pop %v830
    %v833 = vmul.f32 %v817, %v831
    %v834 = vmul.f32 %v818, %v832
    %v835 = vlaneseq
    %v836 = vshrl.u32 %v835, 7
    %v837 = vsub.s32 6, %v836
    %v838 = vrot.slane %v134, %v837
    %v839 = vmul.f32 %v833, %v838
    %v840 = vmul.f32 %v834, %v838
    %v841 = vlaneseq
    %v842 = vshrl.u32 %v841, 7
    %v843 = vsub.s32 7, %v842
    %v844 = vrot.slane %v134, %v843
    %v845 = vadd.f32 %v839, %v844
    %v846 = vadd.f32 %v840, %v844
    %s847 = scalar_lea.vmem [#allocation2], 256
    %v848 = vld [vmem:[%s847] sm:$0xff]
    %v849 = vld [vmem:[%s847 + $0x8] sm:$0xff]
    %v850 = vld [vmem:[%s847 + $0x10] sm:$0xff]
    %v851 = vld [vmem:[%s847 + $0x18] sm:$0xff]
    %s852 = scalar_lea.vmem [#allocation2], 320
    %v853 = vld [vmem:[%s852] sm:$0xff]
    %v854 = vld [vmem:[%s852 + $0x8] sm:$0xff]
    %v855 = vld [vmem:[%s852 + $0x10] sm:$0xff]
    %v856 = vld [vmem:[%s852 + $0x18] sm:$0xff]
    %s857 = scalar_lea.vmem [#allocation2], 384
    %v858 = vld [vmem:[%s857] sm:$0xff]
    %v859 = vld [vmem:[%s857 + $0x8] sm:$0xff]
    %v860 = vld [vmem:[%s857 + $0x10] sm:$0xff]
    %v861 = vld [vmem:[%s857 + $0x18] sm:$0xff]
    %s862 = scalar_lea.vmem [#allocation2], 448
    %v863 = vld [vmem:[%s862] sm:$0xff]
    %v864 = vld [vmem:[%s862 + $0x8] sm:$0xff]
    %v865 = vld [vmem:[%s862 + $0x10] sm:$0xff]
    %v866 = vld [vmem:[%s862 + $0x18] sm:$0xff]
    %v867 = vld [vmem:[%s862 + $0x20] sm:$0xff]
    %v868 = vld [vmem:[%s862 + $0x28] sm:$0xff]
    %v869 = vld [vmem:[%s862 + $0x30] sm:$0xff]
    %v870 = vld [vmem:[%s862 + $0x38] sm:$0xff]
    %s871 = scalar_lea.vmem %s3, 8
    %v872 = vld [vmem:[%s871] sm:$0xff]
    %v873 = vlaneseq
    %v874 = vshrl.u32 %v873, 7
    %v875 = vsub.s32 0, %v874
    %v876 = vrot.slane %v872, %v875
    %v878 = vsel %vm71, %v845, 0
    %v881 = vsel %vm71, %v846, 0
    %883 = vmatprep.subr.mxu0 0.0
    %884 = vmatpush1.msra.mxu0 %v848
    %885 = vmatprep.subr.mxu0 0.0
    %886 = vmatpush1.msra.mxu0 %v849
    %887 = vmatprep.subr.mxu0 0.0
    %888 = vmatpush1.msra.mxu0 %v850
    %889 = vmatprep.subr.mxu0 0.0
    %890 = vmatpush1.msra.mxu0 %v851
    %891 = vmatprep.subr.mxu0 0.0
    %892 = vmatpush1.msra.mxu0 0.0
    %893 = vmatprep.subr.mxu0 0.0
    %894 = vmatpush1.msra.mxu0 0.0
    %895 = vmatprep.subr.mxu0 0.0
    %896 = vmatpush1.msra.mxu0 0.0
    %897 = vmatprep.subr.mxu0 0.0
    %898 = vmatpush1.msra.mxu0 0.0
    %899 = vmatprep.subr.mxu0 0.0
    %900 = vmatpush1.msra.mxu0 0.0
    %901 = vmatprep.subr.mxu0 0.0
    %902 = vmatpush1.msra.mxu0 0.0
    %903 = vmatprep.subr.mxu0 0.0
    %904 = vmatpush1.msra.mxu0 0.0
    %905 = vmatprep.subr.mxu0 0.0
    %906 = vmatpush1.msra.mxu0 0.0
    %907 = vmatprep.subr.mxu0 0.0
    %908 = vmatpush1.msra.mxu0 0.0
    %909 = vmatprep.subr.mxu0 0.0
    %910 = vmatpush1.msra.mxu0 0.0
    %911 = vmatprep.subr.mxu0 0.0
    %912 = vmatpush1.msra.mxu0 0.0
    %913 = vmatprep.subr.mxu0 0.0
    %914 = vmatpush1.msra.mxu0 0.0
    %915 = vmatprep.subr.mxu0 0.0
    %916 = vmatpush1.msra.mxu0 0.0
    %917 = vmatprep.subr.mxu0 0.0
    %918 = vmatpush1.msra.mxu0 0.0
    %919 = vmatprep.subr.mxu0 0.0
    %920 = vmatpush1.msra.mxu0 0.0
    %921 = vmatprep.subr.mxu0 0.0
    %922 = vmatpush1.msra.mxu0 0.0
    %923 = vmatprep.subr.mxu0 0.0
    %924 = vmatpush1.msra.mxu0 0.0
    %925 = vmatprep.subr.mxu0 0.0
    %926 = vmatpush1.msra.mxu0 0.0
    %927 = vmatprep.subr.mxu0 0.0
    %928 = vmatpush1.msra.mxu0 0.0
    %929 = vmatprep.subr.mxu0 0.0
    %930 = vmatpush1.msra.mxu0 0.0
    %931 = vmatprep.subr.mxu0 0.0
    %932 = vmatpush1.msra.mxu0 0.0
    %933 = vmatprep.subr.mxu0 0.0
    %934 = vmatpush1.msra.mxu0 0.0
    %935 = vmatprep.subr.mxu0 0.0
    %936 = vmatpush1.msra.mxu0 0.0
    %937 = vmatprep.subr.mxu0 0.0
    %938 = vmatpush1.msra.mxu0 0.0
    %939 = vmatprep.subr.mxu0 0.0
    %940 = vmatpush1.msra.mxu0 0.0
    %941 = vmatprep.subr.mxu0 0.0
    %942 = vmatpush1.msra.mxu0 0.0
    %943 = vmatprep.subr.mxu0 0.0
    %944 = vmatpush1.msra.mxu0 0.0
    %945 = vmatprep.subr.mxu0 0.0
    %946 = vmatpush1.msra.mxu0 0.0
    %947 = vmatprep.mubr.f32.mxu0 0.0
    %948 = vmatmul.mubr.f32.gmra.mrb[0].mxu0 %v878
    %v949 = vpop.f32.mrb[0].mxu0
    %v950 = vadd.f32 %v876, %v949
    %v951 = vpop.f32.mrb[0].mxu0
    %952 = vmatprep.mubr.f32.mxu0 0.0
    %953 = vmatmul.mubr.f32.gmra.mrb[0].mxu0 %v881
    %v954 = vpop.f32.mrb[0].mxu0
    %v955 = vadd.f32 %v876, %v954
    %v956 = vpop.f32.mrb[0].mxu0
    %957 = vdwg.mxu0
    %v958 = vmul.f32 %v950, %v58
    %v959 = vmul.f32 %v950, %v63
    %v960 = vmul.f32 %v955, %v58
    %v961 = vmul.f32 %v955, %v63
    %964 = vrot.lane.b32.xlu0 %v950, 96
    %v965 = vpop.permute.xlu0 %964
    %966 = vrot.lane.b32.xlu0 %v955, 96
    %v967 = vpop.permute.xlu0 %966
    %v969 = vsel %vm71, %v958, 0
    %v972 = vsel %vm71, %v959, 0
    %v975 = vsel %vm71, %v960, 0
    %v978 = vsel %vm71, %v961, 0
    %v980 = vsel %vm71, %v965, 0
    %v982 = vsel %vm71, %v967, 0
    %984 = vmatprep.subr.mxu0 0.0
    %985 = vmatpush1.xpose.msra.mxu0 %v980
    %986 = vmatprep.subr.mxu0 0.0
    %987 = vmatpush1.xpose.msra.mxu0 %v982
    %988 = vmatprep.subr.mxu0 0.0
    %989 = vmatpush1.xpose.msra.mxu0 0.0
    %990 = vmatprep.subr.mxu0 0.0
    %991 = vmatpush1.xpose.msra.mxu0 0.0
    %992 = vmatprep.subr.mxu0 0.0
    %993 = vmatpush1.xpose.msra.mxu0 0.0
    %994 = vmatprep.subr.mxu0 0.0
    %995 = vmatpush1.xpose.msra.mxu0 0.0
    %996 = vmatprep.subr.mxu0 0.0
    %997 = vmatpush1.xpose.msra.mxu0 0.0
    %998 = vmatprep.subr.mxu0 0.0
    %999 = vmatpush1.xpose.msra.mxu0 0.0
    %1000 = vmatprep.subr.mxu0 0.0
    %1001 = vmatpush1.xpose.msra.mxu0 0.0
    %1002 = vmatprep.subr.mxu0 0.0
    %1003 = vmatpush1.xpose.msra.mxu0 0.0
    %1004 = vmatprep.subr.mxu0 0.0
    %1005 = vmatpush1.xpose.msra.mxu0 0.0
    %1006 = vmatprep.subr.mxu0 0.0
    %1007 = vmatpush1.xpose.msra.mxu0 0.0
    %1008 = vmatprep.subr.mxu0 0.0
    %1009 = vmatpush1.xpose.msra.mxu0 0.0
    %1010 = vmatprep.subr.mxu0 0.0
    %1011 = vmatpush1.xpose.msra.mxu0 0.0
    %1012 = vmatprep.subr.mxu0 0.0
    %1013 = vmatpush1.xpose.msra.mxu0 0.0
    %1014 = vmatprep.subr.mxu0 0.0
    %1015 = vmatpush1.xpose.msra.mxu0 0.0
    %1016 = vmatprep.subr.mxu0 0.0
    %1017 = vmatpush1.xpose.msra.mxu0 0.0
    %1018 = vmatprep.subr.mxu0 0.0
    %1019 = vmatpush1.xpose.msra.mxu0 0.0
    %1020 = vmatprep.subr.mxu0 0.0
    %1021 = vmatpush1.xpose.msra.mxu0 0.0
    %1022 = vmatprep.subr.mxu0 0.0
    %1023 = vmatpush1.xpose.msra.mxu0 0.0
    %1024 = vmatprep.subr.mxu0 0.0
    %1025 = vmatpush1.xpose.msra.mxu0 0.0
    %1026 = vmatprep.subr.mxu0 0.0
    %1027 = vmatpush1.xpose.msra.mxu0 0.0
    %1028 = vmatprep.subr.mxu0 0.0
    %1029 = vmatpush1.xpose.msra.mxu0 0.0
    %1030 = vmatprep.subr.mxu0 0.0
    %1031 = vmatpush1.xpose.msra.mxu0 0.0
    %1032 = vmatprep.subr.mxu0 0.0
    %1033 = vmatpush1.xpose.msra.mxu0 0.0
    %1034 = vmatprep.subr.mxu0 0.0
    %1035 = vmatpush1.xpose.msra.mxu0 0.0
    %1036 = vmatprep.subr.mxu0 0.0
    %1037 = vmatpush1.xpose.msra.mxu0 0.0
    %1038 = vmatprep.subr.mxu0 0.0
    %1039 = vmatpush1.xpose.msra.mxu0 0.0
    %1040 = vmatprep.subr.mxu0 0.0
    %1041 = vmatpush1.xpose.msra.mxu0 0.0
    %1042 = vmatprep.subr.mxu0 0.0
    %1043 = vmatpush1.xpose.msra.mxu0 0.0
    %1044 = vmatprep.subr.mxu0 0.0
    %1045 = vmatpush1.xpose.msra.mxu0 0.0
    %1046 = vmatprep.subr.mxu0 0.0
    %1047 = vmatpush1.xpose.msra.mxu0 0.0
    %1048 = vmatprep.mubr.f32.mxu0 0.0
    %1049 = vmatmul.mubr.f32.gmra.mrb[0].mxu0 %v969
    %v1050 = vpop.f32.mrb[0].mxu0
    %v1051 = vadd.f32 0.0, %v1050
    %v1052 = vpop.f32.mrb[0].mxu0
    %1053 = vmatprep.mubr.f32.mxu0 0.0
    %1054 = vmatmul.mubr.f32.gmra.mrb[0].mxu0 %v972
    %v1055 = vpop.f32.mrb[0].mxu0
    %v1056 = vadd.f32 0.0, %v1055
    %v1057 = vpop.f32.mrb[0].mxu0
    %1058 = vmatprep.mubr.f32.mxu0 0.0
    %1059 = vmatmul.mubr.f32.gmra.mrb[0].mxu0 %v975
    %v1060 = vpop.f32.mrb[0].mxu0
    %v1061 = vadd.f32 0.0, %v1060
    %v1062 = vpop.f32.mrb[0].mxu0
    %1063 = vmatprep.mubr.f32.mxu0 0.0
    %1064 = vmatmul.mubr.f32.gmra.mrb[0].mxu0 %v978
    %v1065 = vpop.f32.mrb[0].mxu0
    %v1066 = vadd.f32 0.0, %v1065
    %v1067 = vpop.f32.mrb[0].mxu0
    %1068 = vdwg.mxu0
    %v1069 = vmul.f32 %v1051, 0.25
    %v1070 = vmul.f32 %v1056, 0.25
    %v1071 = vmul.f32 %v1061, 0.25
    %v1072 = vmul.f32 %v1066, 0.25
    %v1073 = vadd.f32 %v1069, %v64
    %v1074 = vadd.f32 %v1070, %v65
    %v1075 = vadd.f32 %v1071, %v66
    %v1076 = vadd.f32 %v1072, %v67
    %v1077 = vsel %vm339, %v1073, -inf
    %1078 = vmax.xlane.f32.xlu0 %v1077
    %v1079 = vpop.xlane.xlu0 %1078
    %v1080 = vsel %vm339, %v1074, -inf
    %1081 = vmax.xlane.f32.xlu0 %v1080
    %v1082 = vpop.xlane.xlu0 %1081
    %v1083 = vsel %vm339, %v1075, -inf
    %1084 = vmax.xlane.f32.xlu0 %v1083
    %v1085 = vpop.xlane.xlu0 %1084
    %v1086 = vsel %vm339, %v1076, -inf
    %1087 = vmax.xlane.f32.xlu0 %v1086
    %v1088 = vpop.xlane.xlu0 %1087
    %v1089 = vsub.f32 %v1073, %v1079
    %v1090 = vsub.f32 %v1074, %v1082
    %v1091 = vsub.f32 %v1075, %v1085
    %v1092 = vsub.f32 %v1076, %v1088
    %v1093 = vmul.f32 %v1089, 1.442695
    %v1094 = vpow.pop %v1093
    %v1095 = vmul.f32 %v1090, 1.442695
    %v1096 = vpow.pop %v1095
    %v1097 = vmul.f32 %v1091, 1.442695
    %v1098 = vpow.pop %v1097
    %v1099 = vmul.f32 %v1092, 1.442695
    %v1100 = vpow.pop %v1099
    %v1101 = vsel %vm339, %v1094, 0.0
    %1102 = vadd.xlane.f32.xlu0 %v1101
    %v1103 = vpop.xlane.xlu0 %1102
    %v1104 = vsel %vm339, %v1096, 0.0
    %1105 = vadd.xlane.f32.xlu0 %v1104
    %v1106 = vpop.xlane.xlu0 %1105
    %v1107 = vsel %vm339, %v1098, 0.0
    %1108 = vadd.xlane.f32.xlu0 %v1107
    %v1109 = vpop.xlane.xlu0 %1108
    %v1110 = vsel %vm339, %v1100, 0.0
    %1111 = vadd.xlane.f32.xlu0 %v1110
    %v1112 = vpop.xlane.xlu0 %1111
    %v1113 = vrcp.pop %v1103
    %v1114 = vrcp.pop %v1106
    %v1115 = vrcp.pop %v1109
    %v1116 = vrcp.pop %v1112
    %v1117 = vmul.f32 %v1094, %v1113
    %v1118 = vmul.f32 %v1096, %v1114
    %v1119 = vmul.f32 %v1098, %v1115
    %v1120 = vmul.f32 %v1100, %v1116
    %1121 = vrot.lane.b32.xlu0 %v950, 64
    %v1122 = vpop.permute.xlu0 %1121
    %1123 = vrot.lane.b32.xlu0 %v955, 64
    %v1124 = vpop.permute.xlu0 %1123
    %v1128 = vsel %vm339, %v1117, 0
    %v1131 = vsel %vm339, %v1118, 0
    %v1134 = vsel %vm339, %v1119, 0
    %v1137 = vsel %vm339, %v1120, 0
    %1139 = vmatprep.subr.mxu0 0.0
    %1140 = vmatpush1.msra.mxu0 %v1122
    %1141 = vmatprep.subr.mxu0 0.0
    %1142 = vmatpush1.msra.mxu0 %v1124
    %1143 = vmatprep.subr.mxu0 0.0
    %1144 = vmatpush1.msra.mxu0 0.0
    %1145 = vmatprep.subr.mxu0 0.0
    %1146 = vmatpush1.msra.mxu0 0.0
    %1147 = vmatprep.subr.mxu0 0.0
    %1148 = vmatpush1.msra.mxu0 0.0
    %1149 = vmatprep.subr.mxu0 0.0
    %1150 = vmatpush1.msra.mxu0 0.0
    %1151 = vmatprep.subr.mxu0 0.0
    %1152 = vmatpush1.msra.mxu0 0.0
    %1153 = vmatprep.subr.mxu0 0.0
    %1154 = vmatpush1.msra.mxu0 0.0
    %1155 = vmatprep.subr.mxu0 0.0
    %1156 = vmatpush1.msra.mxu0 0.0
    %1157 = vmatprep.subr.mxu0 0.0
    %1158 = vmatpush1.msra.mxu0 0.0
    %1159 = vmatprep.subr.mxu0 0.0
    %1160 = vmatpush1.msra.mxu0 0.0
    %1161 = vmatprep.subr.mxu0 0.0
    %1162 = vmatpush1.msra.mxu0 0.0
    %1163 = vmatprep.subr.mxu0 0.0
    %1164 = vmatpush1.msra.mxu0 0.0
    %1165 = vmatprep.subr.mxu0 0.0
    %1166 = vmatpush1.msra.mxu0 0.0
    %1167 = vmatprep.subr.mxu0 0.0
    %1168 = vmatpush1.msra.mxu0 0.0
    %1169 = vmatprep.subr.mxu0 0.0
    %1170 = vmatpush1.msra.mxu0 0.0
    %1171 = vmatprep.subr.mxu0 0.0
    %1172 = vmatpush1.msra.mxu0 0.0
    %1173 = vmatprep.subr.mxu0 0.0
    %1174 = vmatpush1.msra.mxu0 0.0
    %1175 = vmatprep.subr.mxu0 0.0
    %1176 = vmatpush1.msra.mxu0 0.0
    %1177 = vmatprep.subr.mxu0 0.0
    %1178 = vmatpush1.msra.mxu0 0.0
    %1179 = vmatprep.subr.mxu0 0.0
    %1180 = vmatpush1.msra.mxu0 0.0
    %1181 = vmatprep.subr.mxu0 0.0
    %1182 = vmatpush1.msra.mxu0 0.0
    %1183 = vmatprep.subr.mxu0 0.0
    %1184 = vmatpush1.msra.mxu0 0.0
    %1185 = vmatprep.subr.mxu0 0.0
    %1186 = vmatpush1.msra.mxu0 0.0
    %1187 = vmatprep.subr.mxu0 0.0
    %1188 = vmatpush1.msra.mxu0 0.0
    %1189 = vmatprep.subr.mxu0 0.0
    %1190 = vmatpush1.msra.mxu0 0.0
    %1191 = vmatprep.subr.mxu0 0.0
    %1192 = vmatpush1.msra.mxu0 0.0
    %1193 = vmatprep.subr.mxu0 0.0
    %1194 = vmatpush1.msra.mxu0 0.0
    %1195 = vmatprep.subr.mxu0 0.0
    %1196 = vmatpush1.msra.mxu0 0.0
    %1197 = vmatprep.subr.mxu0 0.0
    %1198 = vmatpush1.msra.mxu0 0.0
    %1199 = vmatprep.subr.mxu0 0.0
    %1200 = vmatpush1.msra.mxu0 0.0
    %1201 = vmatprep.subr.mxu0 0.0
    %1202 = vmatpush1.msra.mxu0 0.0
    %1203 = vmatprep.mubr.f32.mxu0 0.0
    %1204 = vmatmul.mubr.f32.gmra.mrb[0].mxu0 %v1128
    %v1205 = vpop.f32.mrb[0].mxu0
    %v1206 = vadd.f32 0.0, %v1205
    %v1207 = vpop.f32.mrb[0].mxu0
    %1208 = vmatprep.mubr.f32.mxu0 0.0
    %1209 = vmatmul.mubr.f32.gmra.mrb[0].mxu0 %v1131
    %v1210 = vpop.f32.mrb[0].mxu0
    %v1211 = vadd.f32 0.0, %v1210
    %v1212 = vpop.f32.mrb[0].mxu0
    %1213 = vmatprep.mubr.f32.mxu0 0.0
    %1214 = vmatmul.mubr.f32.gmra.mrb[0].mxu0 %v1134
    %v1215 = vpop.f32.mrb[0].mxu0
    %v1216 = vadd.f32 0.0, %v1215
    %v1217 = vpop.f32.mrb[0].mxu0
    %1218 = vmatprep.mubr.f32.mxu0 0.0
    %1219 = vmatmul.mubr.f32.gmra.mrb[0].mxu0 %v1137
    %v1220 = vpop.f32.mrb[0].mxu0
    %v1221 = vadd.f32 0.0, %v1220
    %v1222 = vpop.f32.mrb[0].mxu0
    %1223 = vdwg.mxu0
    %v1224 = vmul.f32 %v1206, %v58
    %v1225 = vmul.f32 %v1211, %v63
    %v1226 = vadd.f32 %v1224, %v1225
    %v1227 = vmul.f32 %v1216, %v58
    %v1228 = vmul.f32 %v1221, %v63
    %v1229 = vadd.f32 %v1227, %v1228
    %v1230 = vlaneseq
    %v1231 = vshrl.u32 %v1230, 7
    %v1232 = vsub.s32 1, %v1231
    %v1233 = vrot.slane %v872, %v1232
    %v1235 = vsel %vm71, %v1226, 0
    %v1238 = vsel %vm71, %v1229, 0
    %1240 = vmatprep.subr.mxu0 0.0
    %1241 = vmatpush1.msra.mxu0 %v853
    %1242 = vmatprep.subr.mxu0 0.0
    %1243 = vmatpush1.msra.mxu0 %v854
    %1244 = vmatprep.subr.mxu0 0.0
    %1245 = vmatpush1.msra.mxu0 %v855
    %1246 = vmatprep.subr.mxu0 0.0
    %1247 = vmatpush1.msra.mxu0 %v856
    %1248 = vmatprep.subr.mxu0 0.0
    %1249 = vmatpush1.msra.mxu0 0.0
    %1250 = vmatprep.subr.mxu0 0.0
    %1251 = vmatpush1.msra.mxu0 0.0
    %1252 = vmatprep.subr.mxu0 0.0
    %1253 = vmatpush1.msra.mxu0 0.0
    %1254 = vmatprep.subr.mxu0 0.0
    %1255 = vmatpush1.msra.mxu0 0.0
    %1256 = vmatprep.subr.mxu0 0.0
    %1257 = vmatpush1.msra.mxu0 0.0
    %1258 = vmatprep.subr.mxu0 0.0
    %1259 = vmatpush1.msra.mxu0 0.0
    %1260 = vmatprep.subr.mxu0 0.0
    %1261 = vmatpush1.msra.mxu0 0.0
    %1262 = vmatprep.subr.mxu0 0.0
    %1263 = vmatpush1.msra.mxu0 0.0
    %1264 = vmatprep.subr.mxu0 0.0
    %1265 = vmatpush1.msra.mxu0 0.0
    %1266 = vmatprep.subr.mxu0 0.0
    %1267 = vmatpush1.msra.mxu0 0.0
    %1268 = vmatprep.subr.mxu0 0.0
    %1269 = vmatpush1.msra.mxu0 0.0
    %1270 = vmatprep.subr.mxu0 0.0
    %1271 = vmatpush1.msra.mxu0 0.0
    %1272 = vmatprep.subr.mxu0 0.0
    %1273 = vmatpush1.msra.mxu0 0.0
    %1274 = vmatprep.subr.mxu0 0.0
    %1275 = vmatpush1.msra.mxu0 0.0
    %1276 = vmatprep.subr.mxu0 0.0
    %1277 = vmatpush1.msra.mxu0 0.0
    %1278 = vmatprep.subr.mxu0 0.0
    %1279 = vmatpush1.msra.mxu0 0.0
    %1280 = vmatprep.subr.mxu0 0.0
    %1281 = vmatpush1.msra.mxu0 0.0
    %1282 = vmatprep.subr.mxu0 0.0
    %1283 = vmatpush1.msra.mxu0 0.0
    %1284 = vmatprep.subr.mxu0 0.0
    %1285 = vmatpush1.msra.mxu0 0.0
    %1286 = vmatprep.subr.mxu0 0.0
    %1287 = vmatpush1.msra.mxu0 0.0
    %1288 = vmatprep.subr.mxu0 0.0
    %1289 = vmatpush1.msra.mxu0 0.0
    %1290 = vmatprep.subr.mxu0 0.0
    %1291 = vmatpush1.msra.mxu0 0.0
    %1292 = vmatprep.subr.mxu0 0.0
    %1293 = vmatpush1.msra.mxu0 0.0
    %1294 = vmatprep.subr.mxu0 0.0
    %1295 = vmatpush1.msra.mxu0 0.0
    %1296 = vmatprep.subr.mxu0 0.0
    %1297 = vmatpush1.msra.mxu0 0.0
    %1298 = vmatprep.subr.mxu0 0.0
    %1299 = vmatpush1.msra.mxu0 0.0
    %1300 = vmatprep.subr.mxu0 0.0
    %1301 = vmatpush1.msra.mxu0 0.0
    %1302 = vmatprep.subr.mxu0 0.0
    %1303 = vmatpush1.msra.mxu0 0.0
    %1304 = vmatprep.mubr.f32.mxu0 0.0
    %1305 = vmatmul.mubr.f32.gmra.mrb[0].mxu0 %v1235
    %v1306 = vpop.f32.mrb[0].mxu0
    %v1307 = vadd.f32 %v1233, %v1306
    %v1308 = vpop.f32.mrb[0].mxu0
    %1309 = vmatprep.mubr.f32.mxu0 0.0
    %1310 = vmatmul.mubr.f32.gmra.mrb[0].mxu0 %v1238
    %v1311 = vpop.f32.mrb[0].mxu0
    %v1312 = vadd.f32 %v1233, %v1311
    %v1313 = vpop.f32.mrb[0].mxu0
    %1314 = vdwg.mxu0
    %v1315 = vadd.f32 %v1307, %v845
    %v1316 = vadd.f32 %v1312, %v846
    %v1317 = vsel %vm71, %v1315, 0.0
    %1318 = vadd.xlane.f32.xlu0 %v1317
    %v1319 = vpop.xlane.xlu0 %1318
    %v1320 = vsel %vm71, %v1316, 0.0
    %1321 = vadd.xlane.f32.xlu0 %v1320
    %v1322 = vpop.xlane.xlu0 %1321
    %v1323 = vmul.f32 %v1319, %v78
    %v1324 = vmul.f32 %v1322, %v78
    %v1325 = vsub.f32 %v1315, %v1323
    %v1326 = vsub.f32 %v1316, %v1324
    %v1327 = vmul.f32 %v1325, %v1325
    %v1328 = vmul.f32 %v1326, %v1326
    %v1329 = vsel %vm71, %v1327, 0.0
    %1330 = vadd.xlane.f32.xlu0 %v1329
    %v1331 = vpop.xlane.xlu0 %1330
    %v1332 = vsel %vm71, %v1328, 0.0
    %1333 = vadd.xlane.f32.xlu0 %v1332
    %v1334 = vpop.xlane.xlu0 %1333
    %v1335 = vmul.f32 %v1331, %v78
    %v1336 = vmul.f32 %v1334, %v78
    %v1337 = vadd.f32 %v1335, 1e-12
    %v1338 = vadd.f32 %v1336, 1e-12
    %v1339 = vrsqrt.pop %v1337
    %v1340 = vrsqrt.pop %v1338
    %v1341 = vmul.f32 %v1325, %v1339
    %v1342 = vmul.f32 %v1326, %v1340
    %v1343 = vlaneseq
    %v1344 = vshrl.u32 %v1343, 7
    %v1345 = vsub.s32 2, %v1344
    %v1346 = vrot.slane %v872, %v1345
    %v1347 = vmul.f32 %v1341, %v1346
    %v1348 = vmul.f32 %v1342, %v1346
    %v1349 = vlaneseq
    %v1350 = vshrl.u32 %v1349, 7
    %v1351 = vsub.s32 3, %v1350
    %v1352 = vrot.slane %v872, %v1351
    %v1353 = vadd.f32 %v1347, %v1352
    %v1354 = vadd.f32 %v1348, %v1352
    %v1355 = vlaneseq
    %v1356 = vshrl.u32 %v1355, 7
    %v1357 = vsub.s32 4, %v1356
    %v1358 = vrot.slane %v872, %v1357
    %v1360 = vsel %vm71, %v1353, 0
    %v1363 = vsel %vm71, %v1354, 0
    %1365 = vmatprep.subr.mxu0 0.0
    %1366 = vmatpush1.msra.mxu0 %v858
    %1367 = vmatprep.subr.mxu0 0.0
    %1368 = vmatpush1.msra.mxu0 %v859
    %1369 = vmatprep.subr.mxu0 0.0
    %1370 = vmatpush1.msra.mxu0 %v860
    %1371 = vmatprep.subr.mxu0 0.0
    %1372 = vmatpush1.msra.mxu0 %v861
    %1373 = vmatprep.subr.mxu0 0.0
    %1374 = vmatpush1.msra.mxu0 0.0
    %1375 = vmatprep.subr.mxu0 0.0
    %1376 = vmatpush1.msra.mxu0 0.0
    %1377 = vmatprep.subr.mxu0 0.0
    %1378 = vmatpush1.msra.mxu0 0.0
    %1379 = vmatprep.subr.mxu0 0.0
    %1380 = vmatpush1.msra.mxu0 0.0
    %1381 = vmatprep.subr.mxu0 0.0
    %1382 = vmatpush1.msra.mxu0 0.0
    %1383 = vmatprep.subr.mxu0 0.0
    %1384 = vmatpush1.msra.mxu0 0.0
    %1385 = vmatprep.subr.mxu0 0.0
    %1386 = vmatpush1.msra.mxu0 0.0
    %1387 = vmatprep.subr.mxu0 0.0
    %1388 = vmatpush1.msra.mxu0 0.0
    %1389 = vmatprep.subr.mxu0 0.0
    %1390 = vmatpush1.msra.mxu0 0.0
    %1391 = vmatprep.subr.mxu0 0.0
    %1392 = vmatpush1.msra.mxu0 0.0
    %1393 = vmatprep.subr.mxu0 0.0
    %1394 = vmatpush1.msra.mxu0 0.0
    %1395 = vmatprep.subr.mxu0 0.0
    %1396 = vmatpush1.msra.mxu0 0.0
    %1397 = vmatprep.subr.mxu0 0.0
    %1398 = vmatpush1.msra.mxu0 0.0
    %1399 = vmatprep.subr.mxu0 0.0
    %1400 = vmatpush1.msra.mxu0 0.0
    %1401 = vmatprep.subr.mxu0 0.0
    %1402 = vmatpush1.msra.mxu0 0.0
    %1403 = vmatprep.subr.mxu0 0.0
    %1404 = vmatpush1.msra.mxu0 0.0
    %1405 = vmatprep.subr.mxu0 0.0
    %1406 = vmatpush1.msra.mxu0 0.0
    %1407 = vmatprep.subr.mxu0 0.0
    %1408 = vmatpush1.msra.mxu0 0.0
    %1409 = vmatprep.subr.mxu0 0.0
    %1410 = vmatpush1.msra.mxu0 0.0
    %1411 = vmatprep.subr.mxu0 0.0
    %1412 = vmatpush1.msra.mxu0 0.0
    %1413 = vmatprep.subr.mxu0 0.0
    %1414 = vmatpush1.msra.mxu0 0.0
    %1415 = vmatprep.subr.mxu0 0.0
    %1416 = vmatpush1.msra.mxu0 0.0
    %1417 = vmatprep.subr.mxu0 0.0
    %1418 = vmatpush1.msra.mxu0 0.0
    %1419 = vmatprep.subr.mxu0 0.0
    %1420 = vmatpush1.msra.mxu0 0.0
    %1421 = vmatprep.subr.mxu0 0.0
    %1422 = vmatpush1.msra.mxu0 0.0
    %1423 = vmatprep.subr.mxu0 0.0
    %1424 = vmatpush1.msra.mxu0 0.0
    %1425 = vmatprep.subr.mxu0 0.0
    %1426 = vmatpush1.msra.mxu0 0.0
    %1427 = vmatprep.subr.mxu0 0.0
    %1428 = vmatpush1.msra.mxu0 0.0
    %1429 = vmatprep.mubr.f32.mxu0 0.0
    %1430 = vmatmul.mubr.f32.gmra.mrb[0].mxu0 %v1360
    %v1431 = vpop.f32.mrb[0].mxu0
    %v1432 = vadd.f32 %v1358, %v1431
    %v1433 = vpop.f32.mrb[0].mxu0
    %1434 = vmatprep.mubr.f32.mxu0 0.0
    %1435 = vmatmul.mubr.f32.gmra.mrb[0].mxu0 %v1363
    %v1436 = vpop.f32.mrb[0].mxu0
    %v1437 = vadd.f32 %v1358, %v1436
    %v1438 = vpop.f32.mrb[0].mxu0
    %1439 = vdwg.mxu0
    %v1440 = vmul.f32 %v1432, 0.5
    %v1441 = vmul.f32 %v1437, 0.5
    %v1442 = vmul.f32 %v1432, 0.044715
    %v1443 = vmul.f32 %v1437, 0.044715
    %v1444 = vmul.f32 %v1442, %v1432
    %v1445 = vmul.f32 %v1443, %v1437
    %v1446 = vmul.f32 %v1444, %v1432
    %v1447 = vmul.f32 %v1445, %v1437
    %v1448 = vadd.f32 %v1432, %v1446
    %v1449 = vadd.f32 %v1437, %v1447
    %v1450 = vmul.f32 %v1448, 0.7978846
    %v1451 = vmul.f32 %v1449, 0.7978846
    %v1452 = vtanh.pop %v1450
    %v1453 = vtanh.pop %v1451
    %v1454 = vadd.f32 %v1452, 1.0
    %v1455 = vadd.f32 %v1453, 1.0
    %v1456 = vmul.f32 %v1440, %v1454
    %v1457 = vmul.f32 %v1441, %v1455
    %v1458 = vlaneseq
    %v1459 = vshrl.u32 %v1458, 7
    %v1460 = vsub.s32 5, %v1459
    %v1461 = vrot.slane %v872, %v1460
    %v1463 = vsel %vm725, %v1456, 0
    %v1466 = vsel %vm725, %v1457, 0
    %1468 = vmatprep.subr.mxu0 0.0
    %1469 = vmatpush1.msra.mxu0 %v863
    %1470 = vmatprep.subr.mxu0 0.0
    %1471 = vmatpush1.msra.mxu0 %v864
    %1472 = vmatprep.subr.mxu0 0.0
    %1473 = vmatpush1.msra.mxu0 %v865
    %1474 = vmatprep.subr.mxu0 0.0
    %1475 = vmatpush1.msra.mxu0 %v866
    %1476 = vmatprep.subr.mxu0 0.0
    %1477 = vmatpush1.msra.mxu0 %v867
    %1478 = vmatprep.subr.mxu0 0.0
    %1479 = vmatpush1.msra.mxu0 %v868
    %1480 = vmatprep.subr.mxu0 0.0
    %1481 = vmatpush1.msra.mxu0 %v869
    %1482 = vmatprep.subr.mxu0 0.0
    %1483 = vmatpush1.msra.mxu0 %v870
    %1484 = vmatprep.subr.mxu0 0.0
    %1485 = vmatpush1.msra.mxu0 0.0
    %1486 = vmatprep.subr.mxu0 0.0
    %1487 = vmatpush1.msra.mxu0 0.0
    %1488 = vmatprep.subr.mxu0 0.0
    %1489 = vmatpush1.msra.mxu0 0.0
    %1490 = vmatprep.subr.mxu0 0.0
    %1491 = vmatpush1.msra.mxu0 0.0
    %1492 = vmatprep.subr.mxu0 0.0
    %1493 = vmatpush1.msra.mxu0 0.0
    %1494 = vmatprep.subr.mxu0 0.0
    %1495 = vmatpush1.msra.mxu0 0.0
    %1496 = vmatprep.subr.mxu0 0.0
    %1497 = vmatpush1.msra.mxu0 0.0
    %1498 = vmatprep.subr.mxu0 0.0
    %1499 = vmatpush1.msra.mxu0 0.0
    %1500 = vmatprep.subr.mxu0 0.0
    %1501 = vmatpush1.msra.mxu0 0.0
    %1502 = vmatprep.subr.mxu0 0.0
    %1503 = vmatpush1.msra.mxu0 0.0
    %1504 = vmatprep.subr.mxu0 0.0
    %1505 = vmatpush1.msra.mxu0 0.0
    %1506 = vmatprep.subr.mxu0 0.0
    %1507 = vmatpush1.msra.mxu0 0.0
    %1508 = vmatprep.subr.mxu0 0.0
    %1509 = vmatpush1.msra.mxu0 0.0
    %1510 = vmatprep.subr.mxu0 0.0
    %1511 = vmatpush1.msra.mxu0 0.0
    %1512 = vmatprep.subr.mxu0 0.0
    %1513 = vmatpush1.msra.mxu0 0.0
    %1514 = vmatprep.subr.mxu0 0.0
    %1515 = vmatpush1.msra.mxu0 0.0
    %1516 = vmatprep.subr.mxu0 0.0
    %1517 = vmatpush1.msra.mxu0 0.0
    %1518 = vmatprep.subr.mxu0 0.0
    %1519 = vmatpush1.msra.mxu0 0.0
    %1520 = vmatprep.subr.mxu0 0.0
    %1521 = vmatpush1.msra.mxu0 0.0
    %1522 = vmatprep.subr.mxu0 0.0
    %1523 = vmatpush1.msra.mxu0 0.0
    %1524 = vmatprep.subr.mxu0 0.0
    %1525 = vmatpush1.msra.mxu0 0.0
    %1526 = vmatprep.subr.mxu0 0.0
    %1527 = vmatpush1.msra.mxu0 0.0
    %1528 = vmatprep.subr.mxu0 0.0
    %1529 = vmatpush1.msra.mxu0 0.0
    %1530 = vmatprep.subr.mxu0 0.0
    %1531 = vmatpush1.msra.mxu0 0.0
    %1532 = vmatprep.mubr.f32.mxu0 0.0
    %1533 = vmatmul.mubr.f32.gmra.mrb[0].mxu0 %v1463
    %v1534 = vpop.f32.mrb[0].mxu0
    %v1535 = vadd.f32 %v1461, %v1534
    %v1536 = vpop.f32.mrb[0].mxu0
    %1537 = vmatprep.mubr.f32.mxu0 0.0
    %1538 = vmatmul.mubr.f32.gmra.mrb[0].mxu0 %v1466
    %v1539 = vpop.f32.mrb[0].mxu0
    %v1540 = vadd.f32 %v1461, %v1539
    %v1541 = vpop.f32.mrb[0].mxu0
    %1542 = vdwg.mxu0
    %v1543 = vadd.f32 %v1535, %v1353
    %v1544 = vadd.f32 %v1540, %v1354
    %v1545 = vsel %vm71, %v1543, 0.0
    %1546 = vadd.xlane.f32.xlu0 %v1545
    %v1547 = vpop.xlane.xlu0 %1546
    %v1548 = vsel %vm71, %v1544, 0.0
    %1549 = vadd.xlane.f32.xlu0 %v1548
    %v1550 = vpop.xlane.xlu0 %1549
    %v1551 = vmul.f32 %v1547, %v78
    %v1552 = vmul.f32 %v1550, %v78
    %v1553 = vsub.f32 %v1543, %v1551
    %v1554 = vsub.f32 %v1544, %v1552
    %v1555 = vmul.f32 %v1553, %v1553
    %v1556 = vmul.f32 %v1554, %v1554
    %v1557 = vsel %vm71, %v1555, 0.0
    %1558 = vadd.xlane.f32.xlu0 %v1557
    %v1559 = vpop.xlane.xlu0 %1558
    %v1560 = vsel %vm71, %v1556, 0.0
    %1561 = vadd.xlane.f32.xlu0 %v1560
    %v1562 = vpop.xlane.xlu0 %1561
    %v1563 = vmul.f32 %v1559, %v78
    %v1564 = vmul.f32 %v1562, %v78
    %v1565 = vadd.f32 %v1563, 1e-12
    %v1566 = vadd.f32 %v1564, 1e-12
    %v1567 = vrsqrt.pop %v1565
    %v1568 = vrsqrt.pop %v1566
    %v1569 = vmul.f32 %v1553, %v1567
    %v1570 = vmul.f32 %v1554, %v1568
    %v1571 = vlaneseq
    %v1572 = vshrl.u32 %v1571, 7
    %v1573 = vsub.s32 6, %v1572
    %v1574 = vrot.slane %v872, %v1573
    %v1575 = vmul.f32 %v1569, %v1574
    %v1576 = vmul.f32 %v1570, %v1574
    %v1577 = vlaneseq
    %v1578 = vshrl.u32 %v1577, 7
    %v1579 = vsub.s32 7, %v1578
    %v1580 = vrot.slane %v872, %v1579
    %v1581 = vadd.f32 %v1575, %v1580
    %v1582 = vadd.f32 %v1576, %v1580
    %v1584 = vrot.slane %v1582, 7
    %vm1586 = vcmask 1040384
    %v1587 = vsel %vm1586, %v1581, %v1584
    %v1588 = vld [vmem:[#allocation5] sm:$0xff]
    %v1589 = vld [vmem:[#allocation5 + $0x8] sm:$0xff]
    %v1590 = vld [vmem:[#allocation5 + $0x10] sm:$0xff]
    %v1591 = vld [vmem:[#allocation5 + $0x18] sm:$0xff]
    %v1592 = vlaneseq
    %v1593 = vshrl.u32 %v1592, 7
    %v1594 = vsub.s32 2, %v1593
    %v1595 = vrot.slane %v68, %v1594
    %v1597 = vsel %vm71, %v1587, 0
    %1599 = vmatprep.subr.mxu0 0.0
    %1600 = vmatpush1.msra.mxu0 %v1588
    %1601 = vmatprep.subr.mxu0 0.0
    %1602 = vmatpush1.msra.mxu0 %v1589
    %1603 = vmatprep.subr.mxu0 0.0
    %1604 = vmatpush1.msra.mxu0 %v1590
    %1605 = vmatprep.subr.mxu0 0.0
    %1606 = vmatpush1.msra.mxu0 %v1591
    %1607 = vmatprep.subr.mxu0 0.0
    %1608 = vmatpush1.msra.mxu0 0.0
    %1609 = vmatprep.subr.mxu0 0.0
    %1610 = vmatpush1.msra.mxu0 0.0
    %1611 = vmatprep.subr.mxu0 0.0
    %1612 = vmatpush1.msra.mxu0 0.0
    %1613 = vmatprep.subr.mxu0 0.0
    %1614 = vmatpush1.msra.mxu0 0.0
    %1615 = vmatprep.subr.mxu0 0.0
    %1616 = vmatpush1.msra.mxu0 0.0
    %1617 = vmatprep.subr.mxu0 0.0
    %1618 = vmatpush1.msra.mxu0 0.0
    %1619 = vmatprep.subr.mxu0 0.0
    %1620 = vmatpush1.msra.mxu0 0.0
    %1621 = vmatprep.subr.mxu0 0.0
    %1622 = vmatpush1.msra.mxu0 0.0
    %1623 = vmatprep.subr.mxu0 0.0
    %1624 = vmatpush1.msra.mxu0 0.0
    %1625 = vmatprep.subr.mxu0 0.0
    %1626 = vmatpush1.msra.mxu0 0.0
    %1627 = vmatprep.subr.mxu0 0.0
    %1628 = vmatpush1.msra.mxu0 0.0
    %1629 = vmatprep.subr.mxu0 0.0
    %1630 = vmatpush1.msra.mxu0 0.0
    %1631 = vmatprep.subr.mxu0 0.0
    %1632 = vmatpush1.msra.mxu0 0.0
    %1633 = vmatprep.subr.mxu0 0.0
    %1634 = vmatpush1.msra.mxu0 0.0
    %1635 = vmatprep.subr.mxu0 0.0
    %1636 = vmatpush1.msra.mxu0 0.0
    %1637 = vmatprep.subr.mxu0 0.0
    %1638 = vmatpush1.msra.mxu0 0.0
    %1639 = vmatprep.subr.mxu0 0.0
    %1640 = vmatpush1.msra.mxu0 0.0
    %1641 = vmatprep.subr.mxu0 0.0
    %1642 = vmatpush1.msra.mxu0 0.0
    %1643 = vmatprep.subr.mxu0 0.0
    %1644 = vmatpush1.msra.mxu0 0.0
    %1645 = vmatprep.subr.mxu0 0.0
    %1646 = vmatpush1.msra.mxu0 0.0
    %1647 = vmatprep.subr.mxu0 0.0
    %1648 = vmatpush1.msra.mxu0 0.0
    %1649 = vmatprep.subr.mxu0 0.0
    %1650 = vmatpush1.msra.mxu0 0.0
    %1651 = vmatprep.subr.mxu0 0.0
    %1652 = vmatpush1.msra.mxu0 0.0
    %1653 = vmatprep.subr.mxu0 0.0
    %1654 = vmatpush1.msra.mxu0 0.0
    %1655 = vmatprep.subr.mxu0 0.0
    %1656 = vmatpush1.msra.mxu0 0.0
    %1657 = vmatprep.subr.mxu0 0.0
    %1658 = vmatpush1.msra.mxu0 0.0
    %1659 = vmatprep.subr.mxu0 0.0
    %1660 = vmatpush1.msra.mxu0 0.0
    %1661 = vmatprep.subr.mxu0 0.0
    %1662 = vmatpush1.msra.mxu0 0.0
    %1663 = vmatprep.mubr.f32.mxu0 0.0
    %1664 = vmatmul.mubr.f32.gmra.mrb[0].mxu0 %v1597
    %v1665 = vpop.f32.mrb[0].mxu0
    %v1666 = vadd.f32 %v1595, %v1665
    %v1667 = vpop.f32.mrb[0].mxu0
    %1668 = vdwg.mxu0
    %v1669 = vtanh.pop %v1666
    %s1670 = scalar_lea.vmem [#allocation5], 32
    %v1671 = vld [vmem:[%s1670] sm:$0xff]
    %v1672 = vld [vmem:[%s1670 + $0x8] sm:$0xff]
    %v1673 = vld [vmem:[%s1670 + $0x10] sm:$0xff]
    %v1674 = vld [vmem:[%s1670 + $0x18] sm:$0xff]
    %v1675 = vlaneseq
    %v1676 = vshrl.u32 %v1675, 7
    %v1677 = vsub.s32 3, %v1676
    %v1678 = vrot.slane %v68, %v1677
    %v1680 = vsel %vm71, %v1669, 0
    %1682 = vmatprep.subr.mxu0 0.0
    %1683 = vmatpush1.msra.mxu0 %v1671
    %1684 = vmatprep.subr.mxu0 0.0
    %1685 = vmatpush1.msra.mxu0 %v1672
    %1686 = vmatprep.subr.mxu0 0.0
    %1687 = vmatpush1.msra.mxu0 %v1673
    %1688 = vmatprep.subr.mxu0 0.0
    %1689 = vmatpush1.msra.mxu0 %v1674
    %1690 = vmatprep.subr.mxu0 0.0
    %1691 = vmatpush1.msra.mxu0 0.0
    %1692 = vmatprep.subr.mxu0 0.0
    %1693 = vmatpush1.msra.mxu0 0.0
    %1694 = vmatprep.subr.mxu0 0.0
    %1695 = vmatpush1.msra.mxu0 0.0
    %1696 = vmatprep.subr.mxu0 0.0
    %1697 = vmatpush1.msra.mxu0 0.0
    %1698 = vmatprep.subr.mxu0 0.0
    %1699 = vmatpush1.msra.mxu0 0.0
    %1700 = vmatprep.subr.mxu0 0.0
    %1701 = vmatpush1.msra.mxu0 0.0
    %1702 = vmatprep.subr.mxu0 0.0
    %1703 = vmatpush1.msra.mxu0 0.0
    %1704 = vmatprep.subr.mxu0 0.0
    %1705 = vmatpush1.msra.mxu0 0.0
    %1706 = vmatprep.subr.mxu0 0.0
    %1707 = vmatpush1.msra.mxu0 0.0
    %1708 = vmatprep.subr.mxu0 0.0
    %1709 = vmatpush1.msra.mxu0 0.0
    %1710 = vmatprep.subr.mxu0 0.0
    %1711 = vmatpush1.msra.mxu0 0.0
    %1712 = vmatprep.subr.mxu0 0.0
    %1713 = vmatpush1.msra.mxu0 0.0
    %1714 = vmatprep.subr.mxu0 0.0
    %1715 = vmatpush1.msra.mxu0 0.0
    %1716 = vmatprep.subr.mxu0 0.0
    %1717 = vmatpush1.msra.mxu0 0.0
    %1718 = vmatprep.subr.mxu0 0.0
    %1719 = vmatpush1.msra.mxu0 0.0
    %1720 = vmatprep.subr.mxu0 0.0
    %1721 = vmatpush1.msra.mxu0 0.0
    %1722 = vmatprep.subr.mxu0 0.0
    %1723 = vmatpush1.msra.mxu0 0.0
    %1724 = vmatprep.subr.mxu0 0.0
    %1725 = vmatpush1.msra.mxu0 0.0
    %1726 = vmatprep.subr.mxu0 0.0
    %1727 = vmatpush1.msra.mxu0 0.0
    %1728 = vmatprep.subr.mxu0 0.0
    %1729 = vmatpush1.msra.mxu0 0.0
    %1730 = vmatprep.subr.mxu0 0.0
    %1731 = vmatpush1.msra.mxu0 0.0
    %1732 = vmatprep.subr.mxu0 0.0
    %1733 = vmatpush1.msra.mxu0 0.0
    %1734 = vmatprep.subr.mxu0 0.0
    %1735 = vmatpush1.msra.mxu0 0.0
    %1736 = vmatprep.subr.mxu0 0.0
    %1737 = vmatpush1.msra.mxu0 0.0
    %1738 = vmatprep.subr.mxu0 0.0
    %1739 = vmatpush1.msra.mxu0 0.0
    %1740 = vmatprep.subr.mxu0 0.0
    %1741 = vmatpush1.msra.mxu0 0.0
    %1742 = vmatprep.subr.mxu0 0.0
    %1743 = vmatpush1.msra.mxu0 0.0
    %1744 = vmatprep.subr.mxu0 0.0
    %1745 = vmatpush1.msra.mxu0 0.0
    %1746 = vmatprep.mubr.f32.mxu0 0.0
    %1747 = vmatmul.mubr.f32.gmra.mrb[0].mxu0 %v1680
    %v1748 = vpop.f32.mrb[0].mxu0
    %v1749 = vadd.f32 %v1678, %v1748
    %v1750 = vpop.f32.mrb[0].mxu0
    %1751 = vdwg.mxu0
    %vm1752 = vcmask 17408
    %1753 = vst.msk [vmem:[#allocation7] sm:$0x3] %vm1752, %v1749
    // Predicated region
    $region34: #{tpu_custom_call.1} parent=1 // pred_check
      _
    $region35: #{tpu_custom_call.1} parent=1 // pred_check_branch
      %1755 = sbr.rel (0) target = $region37
    $region36: #{tpu_custom_call.1} parent=1 // pred_region
      %s1757 = ssub.s32 32, 32
      %1758 = vsyncadd [#allocation4], %s1757
      %s1760 = sshll.u32 [#allocation7], 4
      %s1761 = int_to_ptr.vmem [resolvable:$true] %s1760
      %1763 = dma.vmem_to_hbm [thread:$0]  %s1761, 32, %s6, [#allocation4]
    $region37: #{tpu_custom_call.1} parent=1 // pred_fallthru
      _
    // Predicated region
    $region38: #{tpu_custom_call.1} parent=1 // pred_check
      _
    $region39: #{tpu_custom_call.1} parent=1 // pred_check_branch
      %1765 = sbr.rel (0) target = $region41
    $region40: #{tpu_custom_call.1} parent=1 // pred_region
      %1766 = dma.done [#allocation4], 32
    $region41: #{tpu_custom_call.1} parent=1 // pred_fallthru
      _
    %1767 = vsyncpa [#allocation3], 1
    %1768 = vsyncpa [#allocation6], 1
    %1769 = vsyncpa [#allocation4], 1

</llo_original>
